<compile_context>
chip_gen: v5e
topology: v5e:2x2
jax: 0.10.0
libtpu: 0.0.40
codegen_flags: <defaults>
</compile_context>

<pallas_src>
import jax
import jax.numpy as jnp
from jax.experimental import pallas as pl
from jax.experimental.pallas import tpu as pltpu


# ----------------------------- kernels --------------------------------------


def se_gate_kernel(s_ref, w1_ref, b1_ref, w2_ref, b2_ref, g_ref):
    # s_ref : [C, 1]       squeezed input (f32)
    # w1_ref: [Cmid, C]    conv2d121 weight, native layout (bf16)
    # b1_ref: [Cmid, 1]    conv2d121 bias (f32)
    # w2_ref: [C, Cmid]    conv2d122 weight, native layout (bf16)
    # b2_ref: [C, 1]       conv2d122 bias (f32)
    # g_ref : [C, 1]       output gate (f32)
    s = s_ref[...].astype(w1_ref.dtype)
    # GEMV 1: [Cmid, C] @ [C, 1] -> [Cmid, 1], f32 accumulation on the MXU, then ReLU.
    h = jnp.dot(w1_ref[...], s, preferred_element_type=jnp.float32) + b1_ref[...]
    h = jnp.maximum(h, 0.0)
    # GEMV 2: [C, Cmid] @ [Cmid, 1] -> [C, 1], then sigmoid.
    z = (
        jnp.dot(w2_ref[...], h.astype(w2_ref.dtype), preferred_element_type=jnp.float32)
        + b2_ref[...]
    )
    g_ref[...] = jax.nn.sigmoid(z)


def se_apply_kernel(g_ref, x_ref, o_ref):
    # g_ref: [block_c, 1]   gate slice
    # x_ref: [block_c, HW]  input tile
    # o_ref: [block_c, HW]  gated output tile
    o_ref[...] = (x_ref[...] * g_ref[...]).astype(o_ref.dtype)


# --------------------------- host-side wrappers ------------------------------


def prepare_se_params(w1, b1, w2, b2, weight_dtype=jnp.bfloat16):
    """Reshape + quantize the conv weights ONCE (call at model/param-prep time, not per fwd)."""
    Cmid, C = w1.shape[0], w1.shape[1]
    return {
        "w1m": w1.reshape(Cmid, C).astype(weight_dtype),
        "b1c": b1.reshape(Cmid, 1).astype(jnp.float32),
        "w2m": w2.reshape(C, Cmid).astype(weight_dtype),
        "b2c": b2.reshape(C, 1).astype(jnp.float32),
    }


def _pick_block_c(C, target_steps=6):
    """Block size (multiple of 8) giving ~target_steps grid steps, preferring an even count."""
    if C <= 8:
        return C
    steps = max(2, min(target_steps, pl.cdiv(C, 8)))
    if steps % 2:
        steps += 1
    bc = pl.cdiv(C, steps)
    bc = pl.cdiv(bc, 8) * 8
    return min(bc, C)


def se_forward(x384, x383, params, *, block_c=None):
    """Pallas implementation of M.forward(x384, x383) with pre-prepared params."""
    N, C, H, W = x383.shape
    assert N == 1 and x384.shape == (1, C, 1, 1)
    HW = H * W
    Cmid = params["w1m"].shape[0]
    assert params["w1m"].shape == (Cmid, C) and params["w2m"].shape == (C, Cmid)

    # Contiguous views only -> no HBM transposes.
    s = x384.reshape(C, 1)
    x2d = x383.reshape(C, HW)

    vmem_full = pl.BlockSpec(memory_space=pltpu.MemorySpace.VMEM)

    # ---- Phase 1: gate, computed once (grid-less => single-buffered resident weights). ----
    g = pl.pallas_call(
        se_gate_kernel,
        out_shape=jax.ShapeDtypeStruct((C, 1), jnp.float32),
        in_specs=[vmem_full] * 5,
        out_specs=vmem_full,
        compiler_params=pltpu.CompilerParams(vmem_limit_bytes=32 * 1024 * 1024),
    )(s, params["w1m"], params["b1c"], params["w2m"], params["b2c"])

    # ---- Phase 2: channel-tiled gate apply (fully parallel grid, even step count). ----
    if block_c is None:
        block_c = _pick_block_c(C)
    assert block_c % 8 == 0 or block_c == C
    grid = (pl.cdiv(C, block_c),)

    out2d = pl.pallas_call(
        se_apply_kernel,
        out_shape=jax.ShapeDtypeStruct((C, HW), x383.dtype),
        grid=grid,
        in_specs=[
            pl.BlockSpec((block_c, 1), lambda i: (i, 0)),   # gate slice
            pl.BlockSpec((block_c, HW), lambda i: (i, 0)),  # x tile
        ],
        out_specs=pl.BlockSpec((block_c, HW), lambda i: (i, 0)),
        compiler_params=pltpu.CompilerParams(
            dimension_semantics=("parallel",),
            vmem_limit_bytes=32 * 1024 * 1024,
        ),
    )(g, x2d)

    return out2d.reshape(1, C, H, W)


# ------------------------------ references ----------------------------------


def se_reference_quantized(x384, x383, params):
    """Mirrors the kernel's quantization exactly (bf16 weights + bf16 activations, f32 acc)."""
    N, C, H, W = x383.shape
    w1f = params["w1m"].astype(jnp.float32)
    w2f = params["w2m"].astype(jnp.float32)
    sq = x384.reshape(C, 1).astype(params["w1m"].dtype).astype(jnp.float32)
    h = jnp.dot(w1f, sq, precision=jax.lax.Precision.HIGHEST) + params["b1c"]
    h = jnp.maximum(h, 0.0)
    hq = h.astype(params["w2m"].dtype).astype(jnp.float32)
    z = jnp.dot(w2f, hq, precision=jax.lax.Precision.HIGHEST) + params["b2c"]
    g = jax.nn.sigmoid(z)
    return (x383.reshape(C, H * W) * g).reshape(1, C, H, W)


def se_reference_f32(x384, x383, w1, b1, w2, b2):
    """Pure-f32 reference mirroring the original PyTorch module semantics."""
    N, C, H, W = x383.shape
    Cmid = w1.shape[0]
    s = x384[:, :, 0, 0]                                   # [1, C]
    w1m = w1.reshape(Cmid, C)
    w2m = w2.reshape(C, Cmid)
    h = jnp.maximum(
        jnp.dot(s, w1m.T, precision=jax.lax.Precision.HIGHEST) + b1, 0.0
    )                                                      # [1, Cmid]
    g = jax.nn.sigmoid(jnp.dot(h, w2m.T, precision=jax.lax.Precision.HIGHEST) + b2)  # [1, C]
    return x383 * g[:, :, None, None]


# --------------------------------- test --------------------------------------

if __name__ == "__main__":

    def run_case(C, Cmid, H, W, key):
        k1, k2, k3, k4, k5, k6 = jax.random.split(key, 6)
        x383 = jax.random.normal(k1, (1, C, H, W), dtype=jnp.float32)
        x384 = jax.random.normal(k2, (1, C, 1, 1), dtype=jnp.float32)
        # Deterministic params (shapes match the torch Conv2d layers).
        w1 = jax.random.normal(k3, (Cmid, C, 1, 1), dtype=jnp.float32) * (1.0 / jnp.sqrt(C))
        b1 = jax.random.normal(k4, (Cmid,), dtype=jnp.float32) * 0.01
        w2 = jax.random.normal(k5, (C, Cmid, 1, 1), dtype=jnp.float32) * (1.0 / jnp.sqrt(Cmid))
        b2 = jax.random.normal(k6, (C,), dtype=jnp.float32) * 0.01

        # Quantize / reshape the weights ONCE (not inside the per-call forward).
        params = prepare_se_params(w1, b1, w2, b2)

        fwd = jax.jit(se_forward)
        out = jax.block_until_ready(fwd(x384, x383, params))
        assert out.shape == (1, C, H, W)

        # Strict check against a reference with IDENTICAL quantization.
        ref_q = se_reference_quantized(x384, x383, params)
        assert jnp.allclose(out, ref_q, rtol=1e-3, atol=1e-3), (
            f"strict check failed: max abs err = {jnp.max(jnp.abs(out - ref_q))}"
        )

        # Loose check against the original full-f32 module semantics
        # (bf16 weight/activation quantization is the only intentional deviation).
        ref_f = se_reference_f32(x384, x383, w1, b1, w2, b2)
        assert jnp.allclose(out, ref_f, rtol=5e-2, atol=5e-2), (
            f"loose check failed: max abs err = {jnp.max(jnp.abs(out - ref_f))}"
        )

    key = jax.random.PRNGKey(0)
    ka, kb = jax.random.split(key)

    # Small-shape smoke test (even step count, ragged last tile exercised).
    run_case(C=512, Cmid=128, H=14, W=14, key=ka)
    # Real regnet_y_128gf SE-block shape.
    run_case(C=2904, Cmid=726, H=14, W=14, key=kb)

    print("KERNEL_OK")
</pallas_src>

<mosaic_0001>
module attributes {stable_mosaic.version = 11 : i64} {
  func.func @se_gate_kernel(%arg0: memref<512x1xf32, #tpu.memory_space<vmem>>, %arg1: memref<128x512xbf16, #tpu.memory_space<vmem>>, %arg2: memref<128x1xf32, #tpu.memory_space<vmem>>, %arg3: memref<512x128xbf16, #tpu.memory_space<vmem>>, %arg4: memref<512x1xf32, #tpu.memory_space<vmem>>, %arg5: memref<512x1xf32, #tpu.memory_space<vmem>>) attributes {dimension_semantics = [], scalar_prefetch = 0 : i64, scratch_operands = 0 : i64, tpu.core_type = #tpu.core_type<tc>} {
    %c0 = arith.constant 0 : index
    %c0_0 = arith.constant 0 : index
    %0 = vector.load %arg0[%c0, %c0_0] : memref<512x1xf32, #tpu.memory_space<vmem>>, vector<512x1xf32>
    %1 = arith.truncf %0 : vector<512x1xf32> to vector<512x1xbf16>
    %c0_1 = arith.constant 0 : index
    %c0_2 = arith.constant 0 : index
    %2 = vector.load %arg1[%c0_1, %c0_2] : memref<128x512xbf16, #tpu.memory_space<vmem>>, vector<128x512xbf16>
    %cst = arith.constant dense<0.000000e+00> : vector<128x1xf32>
    %3 = tpu.matmul %2, %1, %cst {dimension_numbers = #tpu.dot_dimension_numbers<[1], [0], [0], [1], [0, 0, 1, 1], [], []>} : vector<128x512xbf16>, vector<512x1xbf16>, vector<128x1xf32> -> vector<128x1xf32>
    %c0_3 = arith.constant 0 : index
    %c0_4 = arith.constant 0 : index
    %4 = vector.load %arg2[%c0_3, %c0_4] : memref<128x1xf32, #tpu.memory_space<vmem>>, vector<128x1xf32>
    %5 = arith.addf %3, %4 : vector<128x1xf32>
    %cst_5 = arith.constant 0.000000e+00 : f32
    %6 = vector.broadcast %cst_5 : f32 to vector<128x1xf32>
    %7 = arith.maximumf %5, %6 : vector<128x1xf32>
    %c0_6 = arith.constant 0 : index
    %c0_7 = arith.constant 0 : index
    %8 = vector.load %arg3[%c0_6, %c0_7] : memref<512x128xbf16, #tpu.memory_space<vmem>>, vector<512x128xbf16>
    %9 = arith.truncf %7 : vector<128x1xf32> to vector<128x1xbf16>
    %cst_8 = arith.constant dense<0.000000e+00> : vector<512x1xf32>
    %10 = tpu.matmul %8, %9, %cst_8 {dimension_numbers = #tpu.dot_dimension_numbers<[1], [0], [0], [1], [0, 0, 1, 1], [], []>} : vector<512x128xbf16>, vector<128x1xbf16>, vector<512x1xf32> -> vector<512x1xf32>
    %c0_9 = arith.constant 0 : index
    %c0_10 = arith.constant 0 : index
    %11 = vector.load %arg4[%c0_9, %c0_10] : memref<512x1xf32, #tpu.memory_space<vmem>>, vector<512x1xf32>
    %12 = arith.addf %10, %11 : vector<512x1xf32>
    %13 = arith.negf %12 : vector<512x1xf32>
    %14 = math.exp %13 : vector<512x1xf32>
    %cst_11 = arith.constant 1.000000e+00 : f32
    %15 = vector.broadcast %cst_11 : f32 to vector<512x1xf32>
    %16 = arith.addf %15, %14 : vector<512x1xf32>
    %17 = arith.divf %15, %16 : vector<512x1xf32>
    %c0_12 = arith.constant 0 : index
    %c0_13 = arith.constant 0 : index
    %18 = vector.load %arg5[%c0_12, %c0_13] : memref<512x1xf32, #tpu.memory_space<vmem>>, vector<512x1xf32>
    tpu.vector_store %arg5[%c0_12, %c0_13], %17 {strides = array<i32>} : memref<512x1xf32, #tpu.memory_space<vmem>>, vector<512x1xf32>,
    return
  }
}

module attributes {stable_mosaic.version = 11 : i64} {
  func.func @se_apply_kernel(%arg0: i32, %arg1: memref<88x1xf32, #tpu.memory_space<vmem>>, %arg2: memref<88x196xf32, #tpu.memory_space<vmem>>, %arg3: memref<88x196xf32, #tpu.memory_space<vmem>>) attributes {dimension_semantics = [#tpu.dimension_semantics<parallel>], iteration_bounds = array<i64: 6>, scalar_prefetch = 0 : i64, scratch_operands = 0 : i64, tpu.core_type = #tpu.core_type<tc>, window_params = [{transform_indices = @transform_0, window_bounds = array<i64: 88, 1>}, {transform_indices = @transform_1, window_bounds = array<i64: 88, 196>}, {transform_indices = @transform_2, window_bounds = array<i64: 88, 196>}]} {
    %c0 = arith.constant 0 : index
    %c0_0 = arith.constant 0 : index
    %0 = vector.load %arg2[%c0, %c0_0] : memref<88x196xf32, #tpu.memory_space<vmem>>, vector<88x196xf32>
    %c0_1 = arith.constant 0 : index
    %c0_2 = arith.constant 0 : index
    %1 = vector.load %arg1[%c0_1, %c0_2] : memref<88x1xf32, #tpu.memory_space<vmem>>, vector<88x1xf32>
    %2 = vector.broadcast %1 : vector<88x1xf32> to vector<88x196xf32>
    %3 = arith.mulf %0, %2 : vector<88x196xf32>
    %c0_3 = arith.constant 0 : index
    %c0_4 = arith.constant 0 : index
    %4 = vector.load %arg3[%c0_3, %c0_4] : memref<88x196xf32, #tpu.memory_space<vmem>>, vector<88x196xf32>
    tpu.vector_store %arg3[%c0_3, %c0_4], %3 {strides = array<i32>} : memref<88x196xf32, #tpu.memory_space<vmem>>, vector<88x196xf32>,
    return
  }
  func.func @transform_0(%arg0: i32) -> (i32, i32) {
    %c0_i32 = arith.constant 0 : i32
    %c0_i32_0 = arith.constant 0 : i32
    return %arg0, %c0_i32 : i32, i32
  }
  func.func @transform_1(%arg0: i32) -> (i32, i32) {
    %c0_i32 = arith.constant 0 : i32
    %c0_i32_0 = arith.constant 0 : i32
    return %arg0, %c0_i32 : i32, i32
  }
  func.func @transform_2(%arg0: i32) -> (i32, i32) {
    %c0_i32 = arith.constant 0 : i32
    %c0_i32_0 = arith.constant 0 : i32
    return %arg0, %c0_i32 : i32, i32
  }
}

</mosaic_0001>

<llo_original>
// kernel: se_forward.3
$region0: #{se_forward.3}
  #allocation0 [shape = 'u32[]', space=smem, size = 0x4, offset = 0x4, fixed_abs, tag = 'smem constant byte address 0x4 - core index']
  #allocation1 [shape = 'u32[72,128]{1,0:T(1,128)}', space=vmem, size = 0x9000, scoped, tag = 'internal scratch']
  %s0 = inlined_call_operand.vmem [shape: f32[512,1], index: 0, kind: input, shape index: {}]
  %s1 = inlined_call_operand.vmem [shape: f32[512,196], index: 1, kind: input, shape index: {}]
  %s2 = inlined_call_operand.vmem [shape: f32[512,196], index: 2, kind: output, shape index: {}]
  %s3 = sld [smem:[#allocation0]]
  $region67: #{se_forward.3} parent=0
    _
  %s5 = ssub.s32 1, %s3
  %s6 = scalar_select 0, %s5, %s3
  $region1: #{se_forward.3} parent=0
    #allocation2 [shape = 'u8[180224]{0}', space=vmem, size = 0x2c000, scoped, tag = 'output window, operand 0']
    loop: start=0, step=1, limit=8
    $region2: #{se_forward.3} parent=1 // loop_pre_header
      _
    $region3: #{se_forward.3} parent=1 // loop_header
      %s8 = sphi 0, %s12
      %p9 = scmp.ge.s32.totalorder %s8, 8
      %s18 = sphi 0, %s20
      %s21 = sphi 0, %s18
      %s22 = sphi 0, %s21
      %s38 = sphi 0, %s22
      %s44 = sphi 0, %s46
      %s47 = sphi 0, %s44
      %s48 = sphi 0, %s47
      %s64 = sphi 0, %s48
      %s70 = sphi 0, %s72
      %s73 = sphi 0, %s70
      %s74 = sphi 0, %s73
      %s90 = sphi 0, %s74
    $region4: #{se_forward.3} parent=1 // loop_header_branch
      %11 = sbr.rel (%p9) target = $region8
    $region5: #{se_forward.3} parent=1 // loop_body
      %s13 = ssub.s32 %s8, 1
      %s14 = ssub.s32 %s8, 2
      %s15 = sadd.s32 %s8, 1
      %s16 = ssub.s32 %s8, %s15
      %p17 = scmp.eq.s32.totalorder %s16, 0
      %s19 = sadd.s32 %s18, 1
      %s20 = scalar_select %p17, %s18, %s19
      %p23 = pneg %p17
      %p24 = scmp.eq.s32.totalorder %s8, 5
      %p25 = por %p23, %p24
      %p26 = scmp.ne.s32.totalorder %s18, %s21
      %p27 = scmp.eq.s32.totalorder %s8, 0
      %p28 = por %p26, %p27
      %p29 = scmp.ne.s32.totalorder %s18, %s21
      %p30 = scmp.eq.s32.totalorder %s13, 5
      %p31 = por %p29, %p30
      %p32 = scmp.ne.s32.totalorder %s21, %s22
      %p33 = scmp.eq.s32.totalorder %s13, 0
      %p34 = por %p32, %p33
      %p35 = scmp.ne.s32.totalorder %s21, %s22
      %p36 = scmp.eq.s32.totalorder %s14, 5
      %p37 = por %p35, %p36
      %p39 = scmp.ne.s32.totalorder %s22, %s38
      %p40 = scmp.eq.s32.totalorder %s14, 0
      %p41 = por %p39, %p40
      %s42 = ssub.s32 %s8, %s15
      %p43 = scmp.eq.s32.totalorder %s42, 0
      %s45 = sadd.s32 %s44, 1
      %s46 = scalar_select %p43, %s44, %s45
      %p49 = pneg %p43
      %p50 = scmp.eq.s32.totalorder %s8, 5
      %p51 = por %p49, %p50
      %p52 = scmp.ne.s32.totalorder %s44, %s47
      %p53 = scmp.eq.s32.totalorder %s8, 0
      %p54 = por %p52, %p53
      %p55 = scmp.ne.s32.totalorder %s44, %s47
      %p56 = scmp.eq.s32.totalorder %s13, 5
      %p57 = por %p55, %p56
      %p58 = scmp.ne.s32.totalorder %s47, %s48
      %p59 = scmp.eq.s32.totalorder %s13, 0
      %p60 = por %p58, %p59
      %p61 = scmp.ne.s32.totalorder %s47, %s48
      %p62 = scmp.eq.s32.totalorder %s14, 5
      %p63 = por %p61, %p62
      %p65 = scmp.ne.s32.totalorder %s48, %s64
      %p66 = scmp.eq.s32.totalorder %s14, 0
      %p67 = por %p65, %p66
      %s68 = ssub.s32 %s8, %s15
      %p69 = scmp.eq.s32.totalorder %s68, 0
      %s71 = sadd.s32 %s70, 1
      %s72 = scalar_select %p69, %s70, %s71
      %p75 = pneg %p69
      %p76 = scmp.eq.s32.totalorder %s8, 5
      %p77 = por %p75, %p76
      %p78 = scmp.ne.s32.totalorder %s70, %s73
      %p79 = scmp.eq.s32.totalorder %s8, 0
      %p80 = por %p78, %p79
      %p81 = scmp.ne.s32.totalorder %s70, %s73
      %p82 = scmp.eq.s32.totalorder %s13, 5
      %p83 = por %p81, %p82
      %p84 = scmp.ne.s32.totalorder %s73, %s74
      %p85 = scmp.eq.s32.totalorder %s13, 0
      %p86 = por %p84, %p85
      %p87 = scmp.ne.s32.totalorder %s73, %s74
      %p88 = scmp.eq.s32.totalorder %s14, 5
      %p89 = por %p87, %p88
      %p91 = scmp.ne.s32.totalorder %s74, %s90
      %p92 = scmp.eq.s32.totalorder %s14, 0
      %p93 = por %p91, %p92
      %p94 = scmp.le.s32.totalorder 1, %s8
      %p95 = scmp.lt.s32.totalorder %s8, 7
      %p96 = pnand %p94, %p95
      %p97 = pneg %p96
      // Predicated region
      $region9: #{se_forward.3} parent=5 // pred_check
        _
      $region10: #{se_forward.3} parent=5 // pred_check_branch
        %99 = sbr.rel (%p96) target = $region12
      $region11: #{se_forward.3} parent=5 // pred_region
        %s100 = ssub.s32 %s8, 1
      $region12: #{se_forward.3} parent=5 // pred_fallthru
        _
      %p101 = scmp.lt.s32.totalorder %s8, 6
      // Predicated region
      $region13: #{se_forward.3} parent=5 // pred_check
        %p102 = pneg %p101
      $region14: #{se_forward.3} parent=5 // pred_check_branch
        %104 = sbr.rel (%p102) target = $region16
      $region15: #{se_forward.3} parent=5 // pred_region
        // Predicated region
        $region17: #{se_forward.3} parent=15 // pred_check
          %p105 = pneg %p28
        $region18: #{se_forward.3} parent=15 // pred_check_branch
          %107 = sbr.rel (%p105) target = $region20
        $region19: #{se_forward.3} parent=15 // pred_region
          %s108 = smul.u32 11, %s8
          %s109 = ssub.s32 64, %s108
          %p110 = scmp.lt.s32.totalorder %s109, 11
          %s111 = scalar_select %p110, %s109, 11
          %s112 = smul.u32 8, %s111
          %p113 = scmp.lt.s32.totalorder %s108, 63
          %s114 = scalar_select %p113, %s108, 63
          %s115 = smul.addr %s114, 8
          %s116 = scalar_lea.vmem %s0, %s115
          %s117 = smul.u32 11, %s8
          %s118 = ssub.s32 64, %s117
          %p119 = scmp.lt.s32.totalorder %s118, 11
          %s120 = scalar_select %p119, %s118, 11
          %s121 = smul.u32 8, %s120
        $region20: #{se_forward.3} parent=15 // pred_fallthru
          _
        // Predicated region
        $region21: #{se_forward.3} parent=15 // pred_check
          %p122 = pneg %p54
        $region22: #{se_forward.3} parent=15 // pred_check_branch
          %124 = sbr.rel (%p122) target = $region24
        $region23: #{se_forward.3} parent=15 // pred_region
          %s125 = smul.u32 11, %s8
          %s126 = ssub.s32 64, %s125
          %p127 = scmp.lt.s32.totalorder %s126, 11
          %s128 = scalar_select %p127, %s126, 11
          %s129 = smul.u32 8, %s128
          %s130 = smul.u32 %s129, 2
          %p131 = scmp.lt.s32.totalorder %s125, 63
          %s132 = scalar_select %p131, %s125, 63
          %s133 = smul.addr %s132, 2
          %s134 = smul.addr %s133, 8
          %s135 = scalar_lea.vmem %s1, %s134
          %s136 = smul.u32 11, %s8
          %s137 = ssub.s32 64, %s136
          %p138 = scmp.lt.s32.totalorder %s137, 11
          %s139 = scalar_select %p138, %s137, 11
          %s140 = smul.u32 8, %s139
          %s141 = smul.u32 %s140, 2
        $region24: #{se_forward.3} parent=15 // pred_fallthru
          _
      $region16: #{se_forward.3} parent=5 // pred_fallthru
        _
      %p142 = scmp.le.s32.totalorder 1, %s8
      %p143 = scmp.lt.s32.totalorder %s8, 7
      %p144 = pnand %p142, %p143
      %p145 = pneg %p144
      // Predicated region
      $region25: #{se_forward.3} parent=5 // pred_check
        _
      $region26: #{se_forward.3} parent=5 // pred_check_branch
        %147 = sbr.rel (%p144) target = $region28
      $region27: #{se_forward.3} parent=5 // pred_region
        %s148 = ssub.s32 %s8, 1
        %s149 = smul.u32 11, %s13
        %s150 = ssub.s32 64, %s149
        %p151 = scmp.lt.s32.totalorder %s150, 11
        %s152 = scalar_select %p151, %s150, 11
        %s153 = smul.u32 8, %s152
        %p154 = scmp.lt.s32.totalorder %s149, 63
        %s155 = scalar_select %p154, %s149, 63
        %s156 = smul.addr %s155, 8
        %s157 = scalar_lea.vmem %s0, %s156
        %p158 = pneg %p34
        %p159 = pneg %p31
        %s160 = smul.u32 11, %s13
        %s161 = ssub.s32 64, %s160
        %p162 = scmp.lt.s32.totalorder %s161, 11
        %s163 = scalar_select %p162, %s161, 11
        %s164 = smul.u32 8, %s163
        %s165 = smul.u32 %s164, 2
        %p166 = scmp.lt.s32.totalorder %s160, 63
        %s167 = scalar_select %p166, %s160, 63
        %s168 = smul.addr %s167, 2
        %s169 = smul.addr %s168, 8
        %s170 = scalar_lea.vmem %s1, %s169
        %p171 = pneg %p60
        %p172 = pneg %p57
        %p173 = pneg %p86
        %p174 = pneg %p83
        %s175 = sand.u32 %s73, 1
        %s176 = sand.u32 %s73, 1
        %s177 = smul.addr %s176, 176
        %s178 = scalar_lea.vmem [#allocation2], %s177
        %s179 = smul.u32 11, %s13
        %s180 = ssub.s32 64, %s179
        %p181 = scmp.lt.s32.totalorder %s180, 11
        %s182 = scalar_select %p181, %s180, 11
        %s183 = smul.u32 8, %s182
        %p184 = scmp.lt.s32.totalorder %s179, 63
        %s185 = scalar_select %p184, %s179, 63
        %s186 = smul.addr %s185, 8
        %s187 = scalar_lea.vmem %s0, %s186
        %s188 = smul.u32 11, %s13
        %s189 = ssub.s32 64, %s188
        %p190 = scmp.lt.s32.totalorder %s189, 11
        %s191 = scalar_select %p190, %s189, 11
        %s192 = smul.u32 8, %s191
        %s193 = smul.u32 11, %s13
        %s194 = ssub.s32 64, %s193
        %p195 = scmp.lt.s32.totalorder %s194, 11
        %s196 = scalar_select %p195, %s194, 11
        %s197 = smul.u32 8, %s196
        %s198 = smul.u32 %s197, 2
        %p199 = scmp.lt.s32.totalorder %s193, 63
        %s200 = scalar_select %p199, %s193, 63
        %s201 = smul.addr %s200, 2
        %s202 = smul.addr %s201, 8
        %s203 = scalar_lea.vmem %s1, %s202
        %s204 = smul.u32 11, %s13
        %s205 = ssub.s32 64, %s204
        %p206 = scmp.lt.s32.totalorder %s205, 11
        %s207 = scalar_select %p206, %s205, 11
        %s208 = smul.u32 8, %s207
        %s209 = smul.u32 %s208, 2
        %s210 = smul.u32 11, %s13
        %s211 = ssub.s32 64, %s210
        %p212 = scmp.lt.s32.totalorder %s211, 11
        %s213 = scalar_select %p212, %s211, 11
        %s214 = smul.u32 8, %s213
        %s215 = smul.u32 %s214, 2
        %v216 = vld [vmem:[%s203] sm:$0xff]
        %v217 = vld [vmem:[%s203 + $0x8] sm:$0xff]
        %v218 = vld [vmem:[%s203 + $0x10] sm:$0xff]
        %v219 = vld [vmem:[%s203 + $0x18] sm:$0xff]
        %v220 = vld [vmem:[%s203 + $0x20] sm:$0xff]
        %v221 = vld [vmem:[%s203 + $0x28] sm:$0xff]
        %v222 = vld [vmem:[%s203 + $0x30] sm:$0xff]
        %v223 = vld [vmem:[%s203 + $0x38] sm:$0xff]
        %v224 = vld [vmem:[%s203 + $0x40] sm:$0xff]
        %v225 = vld [vmem:[%s203 + $0x48] sm:$0xff]
        %v226 = vld [vmem:[%s203 + $0x50] sm:$0xff]
        %v227 = vld [vmem:[%s203 + $0x58] sm:$0xff]
        %v228 = vld [vmem:[%s203 + $0x60] sm:$0xff]
        %v229 = vld [vmem:[%s203 + $0x68] sm:$0xff]
        %v230 = vld [vmem:[%s203 + $0x70] sm:$0xff]
        %v231 = vld [vmem:[%s203 + $0x78] sm:$0xff]
        %v232 = vld [vmem:[%s203 + $0x80] sm:$0xff]
        %v233 = vld [vmem:[%s203 + $0x88] sm:$0xff]
        %v234 = vld [vmem:[%s203 + $0x90] sm:$0xff]
        %v235 = vld [vmem:[%s203 + $0x98] sm:$0xff]
        %v236 = vld [vmem:[%s203 + $0xa0] sm:$0xff]
        %v237 = vld [vmem:[%s203 + $0xa8] sm:$0xff]
        %v238 = vld [vmem:[%s187] sm:$0xff]
        %v239 = vld [vmem:[%s187 + $0x8] sm:$0xff]
        %v240 = vld [vmem:[%s187 + $0x10] sm:$0xff]
        %v241 = vld [vmem:[%s187 + $0x18] sm:$0xff]
        %v242 = vld [vmem:[%s187 + $0x20] sm:$0xff]
        %v243 = vld [vmem:[%s187 + $0x28] sm:$0xff]
        %v244 = vld [vmem:[%s187 + $0x30] sm:$0xff]
        %v245 = vld [vmem:[%s187 + $0x38] sm:$0xff]
        %v246 = vld [vmem:[%s187 + $0x40] sm:$0xff]
        %v247 = vld [vmem:[%s187 + $0x48] sm:$0xff]
        %v248 = vld [vmem:[%s187 + $0x50] sm:$0xff]
        %250 = vset.pattern.permute.xlu0 0
        %251 = vperm.xlu0 %250, %v238
        %v252 = vpop.permute.xlu0 %251
        %255 = vset.pattern.permute.xlu0 0
        %256 = vperm.xlu0 %255, %v239
        %v257 = vpop.permute.xlu0 %256
        %260 = vset.pattern.permute.xlu0 0
        %261 = vperm.xlu0 %260, %v240
        %v262 = vpop.permute.xlu0 %261
        %265 = vset.pattern.permute.xlu0 0
        %266 = vperm.xlu0 %265, %v241
        %v267 = vpop.permute.xlu0 %266
        %270 = vset.pattern.permute.xlu0 0
        %271 = vperm.xlu0 %270, %v242
        %v272 = vpop.permute.xlu0 %271
        %275 = vset.pattern.permute.xlu0 0
        %276 = vperm.xlu0 %275, %v243
        %v277 = vpop.permute.xlu0 %276
        %280 = vset.pattern.permute.xlu0 0
        %281 = vperm.xlu0 %280, %v244
        %v282 = vpop.permute.xlu0 %281
        %285 = vset.pattern.permute.xlu0 0
        %286 = vperm.xlu0 %285, %v245
        %v287 = vpop.permute.xlu0 %286
        %290 = vset.pattern.permute.xlu0 0
        %291 = vperm.xlu0 %290, %v246
        %v292 = vpop.permute.xlu0 %291
        %295 = vset.pattern.permute.xlu0 0
        %296 = vperm.xlu0 %295, %v247
        %v297 = vpop.permute.xlu0 %296
        %300 = vset.pattern.permute.xlu0 0
        %301 = vperm.xlu0 %300, %v248
        %v302 = vpop.permute.xlu0 %301
        %v304 = vmul.f32 %v216, %v252
        %v305 = vmul.f32 %v217, %v252
        %v306 = vmul.f32 %v218, %v257
        %v307 = vmul.f32 %v219, %v257
        %v308 = vmul.f32 %v220, %v262
        %v309 = vmul.f32 %v221, %v262
        %v310 = vmul.f32 %v222, %v267
        %v311 = vmul.f32 %v223, %v267
        %v312 = vmul.f32 %v224, %v272
        %v313 = vmul.f32 %v225, %v272
        %v314 = vmul.f32 %v226, %v277
        %v315 = vmul.f32 %v227, %v277
        %v316 = vmul.f32 %v228, %v282
        %v317 = vmul.f32 %v229, %v282
        %v318 = vmul.f32 %v230, %v287
        %v319 = vmul.f32 %v231, %v287
        %v320 = vmul.f32 %v232, %v292
        %v321 = vmul.f32 %v233, %v292
        %v322 = vmul.f32 %v234, %v297
        %v323 = vmul.f32 %v235, %v297
        %v324 = vmul.f32 %v236, %v302
        %v325 = vmul.f32 %v237, %v302
        %326 = vst [vmem:[%s178] sm:$0xff] %v304
        %vm327 = vcmask 556032
        %328 = vst.msk [vmem:[%s178 + $0x8] sm:$0xff] %vm327, %v305
        %329 = vst [vmem:[%s178 + $0x10] sm:$0xff] %v306
        %330 = vst.msk [vmem:[%s178 + $0x18] sm:$0xff] %vm327, %v307
        %331 = vst [vmem:[%s178 + $0x20] sm:$0xff] %v308
        %332 = vst.msk [vmem:[%s178 + $0x28] sm:$0xff] %vm327, %v309
        %333 = vst [vmem:[%s178 + $0x30] sm:$0xff] %v310
        %334 = vst.msk [vmem:[%s178 + $0x38] sm:$0xff] %vm327, %v311
        %335 = vst [vmem:[%s178 + $0x40] sm:$0xff] %v312
        %336 = vst.msk [vmem:[%s178 + $0x48] sm:$0xff] %vm327, %v313
        %337 = vst [vmem:[%s178 + $0x50] sm:$0xff] %v314
        %338 = vst.msk [vmem:[%s178 + $0x58] sm:$0xff] %vm327, %v315
        %339 = vst [vmem:[%s178 + $0x60] sm:$0xff] %v316
        %340 = vst.msk [vmem:[%s178 + $0x68] sm:$0xff] %vm327, %v317
        %341 = vst [vmem:[%s178 + $0x70] sm:$0xff] %v318
        %342 = vst.msk [vmem:[%s178 + $0x78] sm:$0xff] %vm327, %v319
        %343 = vst [vmem:[%s178 + $0x80] sm:$0xff] %v320
        %344 = vst.msk [vmem:[%s178 + $0x88] sm:$0xff] %vm327, %v321
        %345 = vst [vmem:[%s178 + $0x90] sm:$0xff] %v322
        %346 = vst.msk [vmem:[%s178 + $0x98] sm:$0xff] %vm327, %v323
        %347 = vst [vmem:[%s178 + $0xa0] sm:$0xff] %v324
        %348 = vst.msk [vmem:[%s178 + $0xa8] sm:$0xff] %vm327, %v325
        %s349 = sand.u32 %s73, 1
        %s350 = sand.u32 %s73, 1
        %s351 = smul.addr %s350, 176
        %s352 = scalar_lea.vmem [#allocation2], %s351
        // Predicated region
        $region29: #{se_forward.3} parent=27 // pred_check
          %p353 = pneg %p83
        $region30: #{se_forward.3} parent=27 // pred_check_branch
          %355 = sbr.rel (%p353) target = $region32
        $region31: #{se_forward.3} parent=27 // pred_region
          %s356 = smul.u32 11, %s13
          %s357 = ssub.s32 64, %s356
          %p358 = scmp.lt.s32.totalorder %s357, 11
          %s359 = scalar_select %p358, %s357, 11
          %s360 = smul.u32 8, %s359
          %s361 = smul.u32 %s360, 2
          %p362 = scmp.ne.s32.totalorder 0, %s361
          %s363 = smul.addr %s356, 2
          %s364 = smul.addr %s363, 8
          %s365 = scalar_lea.vmem %s2, %s364
          // Predicated region
          $region33: #{se_forward.3} parent=31 // pred_check
            %p366 = pneg %p362
          $region34: #{se_forward.3} parent=31 // pred_check_branch
            %368 = sbr.rel (%p366) target = $region36
          $region35: #{se_forward.3} parent=31 // pred_region
            // Predicated region
            $region37: #{se_forward.3} parent=35 // pred_check
              _
            $region38: #{se_forward.3} parent=35 // pred_check_branch
              %370 = sbr.rel (0) target = $region40
            $region39: #{se_forward.3} parent=35 // pred_region
              %s371 = sdiv.u32.pop %s359, 11
              %s372 = srem.u32.pop %s359, 11
              // While loop
              $region41: #{se_forward.3} parent=39 // loop_pre_header
                _
              $region42: #{se_forward.3} parent=39 // loop_header
                %s374 = sphi 0, %s376
                %p375 = scmp.ge.s32.totalorder %s374, %s371
                %s379 = sphi 0, %s428
                %s380 = sphi %s352, %s431
                %s381 = sphi %s365, %s432
              $region43: #{se_forward.3} parent=39 // loop_header_branch
                %378 = sbr.rel (%p375) target = $region47
              $region44: #{se_forward.3} parent=39 // loop_body
                %v382 = vld [vmem:[%s380] sm:$0xff]
                %383 = vst [vmem:[%s381] sm:$0xff] %v382
                %v384 = vld [vmem:[%s380 + $0x10] sm:$0xff]
                %385 = vst [vmem:[%s381 + $0x10] sm:$0xff] %v384
                %v386 = vld [vmem:[%s380 + $0x20] sm:$0xff]
                %387 = vst [vmem:[%s381 + $0x20] sm:$0xff] %v386
                %v388 = vld [vmem:[%s380 + $0x30] sm:$0xff]
                %389 = vst [vmem:[%s381 + $0x30] sm:$0xff] %v388
                %v390 = vld [vmem:[%s380 + $0x40] sm:$0xff]
                %391 = vst [vmem:[%s381 + $0x40] sm:$0xff] %v390
                %v392 = vld [vmem:[%s380 + $0x50] sm:$0xff]
                %393 = vst [vmem:[%s381 + $0x50] sm:$0xff] %v392
                %v394 = vld [vmem:[%s380 + $0x60] sm:$0xff]
                %395 = vst [vmem:[%s381 + $0x60] sm:$0xff] %v394
                %v396 = vld [vmem:[%s380 + $0x70] sm:$0xff]
                %397 = vst [vmem:[%s381 + $0x70] sm:$0xff] %v396
                %v398 = vld [vmem:[%s380 + $0x80] sm:$0xff]
                %399 = vst [vmem:[%s381 + $0x80] sm:$0xff] %v398
                %v400 = vld [vmem:[%s380 + $0x90] sm:$0xff]
                %401 = vst [vmem:[%s381 + $0x90] sm:$0xff] %v400
                %v402 = vld [vmem:[%s380 + $0xa0] sm:$0xff]
                %403 = vst [vmem:[%s381 + $0xa0] sm:$0xff] %v402
                %v404 = vld [vmem:[%s380 + $0x8] sm:$0xff]
                %405 = vst [vmem:[%s381 + $0x8] sm:$0xff] %v404
                %v406 = vld [vmem:[%s380 + $0x18] sm:$0xff]
                %407 = vst [vmem:[%s381 + $0x18] sm:$0xff] %v406
                %v408 = vld [vmem:[%s380 + $0x28] sm:$0xff]
                %409 = vst [vmem:[%s381 + $0x28] sm:$0xff] %v408
                %v410 = vld [vmem:[%s380 + $0x38] sm:$0xff]
                %411 = vst [vmem:[%s381 + $0x38] sm:$0xff] %v410
                %v412 = vld [vmem:[%s380 + $0x48] sm:$0xff]
                %413 = vst [vmem:[%s381 + $0x48] sm:$0xff] %v412
                %v414 = vld [vmem:[%s380 + $0x58] sm:$0xff]
                %415 = vst [vmem:[%s381 + $0x58] sm:$0xff] %v414
                %v416 = vld [vmem:[%s380 + $0x68] sm:$0xff]
                %417 = vst [vmem:[%s381 + $0x68] sm:$0xff] %v416
                %v418 = vld [vmem:[%s380 + $0x78] sm:$0xff]
                %419 = vst [vmem:[%s381 + $0x78] sm:$0xff] %v418
                %v420 = vld [vmem:[%s380 + $0x88] sm:$0xff]
                %421 = vst [vmem:[%s381 + $0x88] sm:$0xff] %v420
                %v422 = vld [vmem:[%s380 + $0x98] sm:$0xff]
                %423 = vst [vmem:[%s381 + $0x98] sm:$0xff] %v422
                %v424 = vld [vmem:[%s380 + $0xa8] sm:$0xff]
                %425 = vst [vmem:[%s381 + $0xa8] sm:$0xff] %v424
                %s426 = sadd.s32 1, %s379
                %p427 = scmp.ge.s32.totalorder %s426, %s371
                %s428 = scalar_select %p427, 0, %s426
                %s429 = smul.u32 %s428, 176
                %s430 = smul.u32 %s428, 176
                %s431 = scalar_lea.vmem %s352, %s429 [#allocation2]
                %s432 = scalar_lea.vmem %s365, %s430
              $region45: #{se_forward.3} parent=39 // loop_footer
                %s376 = sadd.s32 %s374, 1
              $region46: #{se_forward.3} parent=39 // loop_footer_branch
                %373 = sbr.rel target = $region42
              $region47: #{se_forward.3} parent=39 // loop_exit
                _
              %s433 = sdiv.u32.pop %s359, 11
              %s434 = srem.u32.pop %s359, 11
              %s435 = smul.u32 %s433, 11
              %s436 = smul.u32 16, %s435
              %s437 = scalar_lea.vmem %s352, %s436 [#allocation2]
              %s438 = smul.u32 16, %s435
              %s439 = scalar_lea.vmem %s365, %s438
              // While loop
              $region48: #{se_forward.3} parent=39 // loop_pre_header
                _
              $region49: #{se_forward.3} parent=39 // loop_header
                %s441 = sphi 0, %s443
                %p442 = scmp.ge.s32.totalorder %s441, %s434
                %s446 = sphi 0, %s455
                %s447 = sphi %s437, %s458
                %s448 = sphi %s439, %s459
              $region50: #{se_forward.3} parent=39 // loop_header_branch
                %445 = sbr.rel (%p442) target = $region54
              $region51: #{se_forward.3} parent=39 // loop_body
                %v449 = vld [vmem:[%s447] sm:$0xff]
                %450 = vst [vmem:[%s448] sm:$0xff] %v449
                %v451 = vld [vmem:[%s447 + $0x8] sm:$0xff]
                %452 = vst [vmem:[%s448 + $0x8] sm:$0xff] %v451
                %s453 = sadd.s32 1, %s446
                %p454 = scmp.ge.s32.totalorder %s453, %s434
                %s455 = scalar_select %p454, 0, %s453
                %s456 = smul.u32 %s455, 16
                %s457 = smul.u32 %s455, 16
                %s458 = scalar_lea.vmem %s437, %s456 [#allocation2]
                %s459 = scalar_lea.vmem %s439, %s457
              $region52: #{se_forward.3} parent=39 // loop_footer
                %s443 = sadd.s32 %s441, 1
              $region53: #{se_forward.3} parent=39 // loop_footer_branch
                %440 = sbr.rel target = $region49
              $region54: #{se_forward.3} parent=39 // loop_exit
                _
            $region40: #{se_forward.3} parent=35 // pred_fallthru
              _
            // Predicated region
            $region55: #{se_forward.3} parent=35 // pred_check
              _
            $region56: #{se_forward.3} parent=35 // pred_check_branch
              %461 = sbr.rel target = $region58
            $region57: #{se_forward.3} parent=35 // pred_region
              _
            $region58: #{se_forward.3} parent=35 // pred_fallthru
              _
          $region36: #{se_forward.3} parent=31 // pred_fallthru
            _
          %462 = vnop
        $region32: #{se_forward.3} parent=27 // pred_fallthru
          _
      $region28: #{se_forward.3} parent=5 // pred_fallthru
        _
      %p463 = scmp.le.s32.totalorder 2, %s8
      // Predicated region
      $region59: #{se_forward.3} parent=5 // pred_check
        %p464 = pneg %p463
      $region60: #{se_forward.3} parent=5 // pred_check_branch
        %466 = sbr.rel (%p464) target = $region62
      $region61: #{se_forward.3} parent=5 // pred_region
        %s467 = ssub.s32 %s8, 2
        // Predicated region
        $region63: #{se_forward.3} parent=61 // pred_check
          %p468 = pneg %p89
        $region64: #{se_forward.3} parent=61 // pred_check_branch
          %470 = sbr.rel (%p468) target = $region66
        $region65: #{se_forward.3} parent=61 // pred_region
          %s471 = sand.u32 %s74, 1
          %s472 = sand.u32 %s74, 1
          %s473 = smul.addr %s472, 176
          %s474 = scalar_lea.vmem [#allocation2], %s473
        $region66: #{se_forward.3} parent=61 // pred_fallthru
          _
      $region62: #{se_forward.3} parent=5 // pred_fallthru
        _
    $region6: #{se_forward.3} parent=1 // loop_footer
      %s12 = sadd.s32 1, %s8
    $region7: #{se_forward.3} parent=1 // loop_footer_branch
      %7 = sbr.rel target = $region3
    $region8: #{se_forward.3} parent=1 // loop_exit
      _

// kernel: se_forward.2
$region0: #{se_forward.2}
  #allocation0 [shape = 'u32[]', space=smem, size = 0x4, offset = 0x4, fixed_abs, tag = 'smem constant byte address 0x4 - core index']
  #allocation1 [shape = 'u32[72,128]{1,0:T(1,128)}', space=vmem, size = 0x9000, scoped, tag = 'internal scratch']
  %s0 = inlined_call_operand.vmem [shape: f32[512,1], index: 0, kind: input, shape index: {}]
  %s1 = inlined_call_operand.vmem [shape: bf16[128,512], index: 1, kind: input, shape index: {}]
  %s2 = inlined_call_operand.vmem [shape: f32[128,1], index: 2, kind: input, shape index: {}]
  %s3 = inlined_call_operand.hbm [shape: bf16[512,128], index: 3, kind: input, shape index: {}]
  %s4 = inlined_call_operand.vmem [shape: f32[512,1], index: 4, kind: input, shape index: {}]
  %s5 = inlined_call_operand.vmem [shape: f32[512,1], index: 5, kind: output, shape index: {}]
  %s6 = sld [smem:[#allocation0]]
  $region34: #{se_forward.2} parent=0
    _
  %s8 = ssub.s32 1, %s6
  %s9 = scalar_select 0, %s8, %s6
  $region1: #{se_forward.2} parent=0
    #allocation2 [shape = 'u8[131072]{0}', space=vmem, size = 0x20000, scoped, tag = 'input window, operand 3, single buffered']
    #allocation3 [shape = 's32[1]{0}', space=sflag, size = 0x4, scoped, tag = 'scoped memory for se_forward.2']
    %10 = vsyncpa [#allocation3], 0
    // Predicated region
    $region2: #{se_forward.2} parent=1 // pred_check
      _
    $region3: #{se_forward.2} parent=1 // pred_check_branch
      %12 = sbr.rel (0) target = $region5
    $region4: #{se_forward.2} parent=1 // pred_region
      _
    $region5: #{se_forward.2} parent=1 // pred_fallthru
      _
    // Predicated region
    $region6: #{se_forward.2} parent=1 // pred_check
      _
    $region7: #{se_forward.2} parent=1 // pred_check_branch
      %14 = sbr.rel (0) target = $region9
    $region8: #{se_forward.2} parent=1 // pred_region
      _
    $region9: #{se_forward.2} parent=1 // pred_fallthru
      _
    // Predicated region
    $region10: #{se_forward.2} parent=1 // pred_check
      _
    $region11: #{se_forward.2} parent=1 // pred_check_branch
      %16 = sbr.rel (0) target = $region13
    $region12: #{se_forward.2} parent=1 // pred_region
      _
    $region13: #{se_forward.2} parent=1 // pred_fallthru
      _
    // Predicated region
    $region14: #{se_forward.2} parent=1 // pred_check
      _
    $region15: #{se_forward.2} parent=1 // pred_check_branch
      %18 = sbr.rel (0) target = $region17
    $region16: #{se_forward.2} parent=1 // pred_region
      %20 = vsyncadd [#allocation3], 0
      %s21 = sshll.u32 %s3, 4
      %s22 = int_to_ptr.hbm [resolvable:$true] %s21
      %s23 = sshll.u32 [#allocation2], 4
      %s24 = int_to_ptr.vmem [resolvable:$true] %s23
      %29 = dma.hbm_to_vmem [thread:$0]  %s22, 4096, %s24, [#allocation3], 64, 64, 4
    $region17: #{se_forward.2} parent=1 // pred_fallthru
      _
    // Predicated region
    $region18: #{se_forward.2} parent=1 // pred_check
      _
    $region19: #{se_forward.2} parent=1 // pred_check_branch
      %31 = sbr.rel (0) target = $region21
    $region20: #{se_forward.2} parent=1 // pred_region
      _
    $region21: #{se_forward.2} parent=1 // pred_fallthru
      _
    // Predicated region
    $region22: #{se_forward.2} parent=1 // pred_check
      _
    $region23: #{se_forward.2} parent=1 // pred_check_branch
      %33 = sbr.rel (0) target = $region25
    $region24: #{se_forward.2} parent=1 // pred_region
      %35 = dma.done [#allocation3], 4096
    $region25: #{se_forward.2} parent=1 // pred_fallthru
      _
    %v36 = vld [vmem:[%s0] sm:$0xff]
    %v37 = vld [vmem:[%s0 + $0x8] sm:$0xff]
    %v38 = vld [vmem:[%s0 + $0x10] sm:$0xff]
    %v39 = vld [vmem:[%s0 + $0x18] sm:$0xff]
    %v40 = vld [vmem:[%s0 + $0x20] sm:$0xff]
    %v41 = vld [vmem:[%s0 + $0x28] sm:$0xff]
    %v42 = vld [vmem:[%s0 + $0x30] sm:$0xff]
    %v43 = vld [vmem:[%s0 + $0x38] sm:$0xff]
    %v44 = vld [vmem:[%s0 + $0x40] sm:$0xff]
    %v45 = vld [vmem:[%s0 + $0x48] sm:$0xff]
    %v46 = vld [vmem:[%s0 + $0x50] sm:$0xff]
    %v47 = vld [vmem:[%s0 + $0x58] sm:$0xff]
    %v48 = vld [vmem:[%s0 + $0x60] sm:$0xff]
    %v49 = vld [vmem:[%s0 + $0x68] sm:$0xff]
    %v50 = vld [vmem:[%s0 + $0x70] sm:$0xff]
    %v51 = vld [vmem:[%s0 + $0x78] sm:$0xff]
    %v52 = vld [vmem:[%s0 + $0x80] sm:$0xff]
    %v53 = vld [vmem:[%s0 + $0x88] sm:$0xff]
    %v54 = vld [vmem:[%s0 + $0x90] sm:$0xff]
    %v55 = vld [vmem:[%s0 + $0x98] sm:$0xff]
    %v56 = vld [vmem:[%s0 + $0xa0] sm:$0xff]
    %v57 = vld [vmem:[%s0 + $0xa8] sm:$0xff]
    %v58 = vld [vmem:[%s0 + $0xb0] sm:$0xff]
    %v59 = vld [vmem:[%s0 + $0xb8] sm:$0xff]
    %v60 = vld [vmem:[%s0 + $0xc0] sm:$0xff]
    %v61 = vld [vmem:[%s0 + $0xc8] sm:$0xff]
    %v62 = vld [vmem:[%s0 + $0xd0] sm:$0xff]
    %v63 = vld [vmem:[%s0 + $0xd8] sm:$0xff]
    %v64 = vld [vmem:[%s0 + $0xe0] sm:$0xff]
    %v65 = vld [vmem:[%s0 + $0xe8] sm:$0xff]
    %v66 = vld [vmem:[%s0 + $0xf0] sm:$0xff]
    %v67 = vld [vmem:[%s0 + $0xf8] sm:$0xff]
    %v68 = vld [vmem:[%s0 + $0x100] sm:$0xff]
    %v69 = vld [vmem:[%s0 + $0x108] sm:$0xff]
    %v70 = vld [vmem:[%s0 + $0x110] sm:$0xff]
    %v71 = vld [vmem:[%s0 + $0x118] sm:$0xff]
    %v72 = vld [vmem:[%s0 + $0x120] sm:$0xff]
    %v73 = vld [vmem:[%s0 + $0x128] sm:$0xff]
    %v74 = vld [vmem:[%s0 + $0x130] sm:$0xff]
    %v75 = vld [vmem:[%s0 + $0x138] sm:$0xff]
    %v76 = vld [vmem:[%s0 + $0x140] sm:$0xff]
    %v77 = vld [vmem:[%s0 + $0x148] sm:$0xff]
    %v78 = vld [vmem:[%s0 + $0x150] sm:$0xff]
    %v79 = vld [vmem:[%s0 + $0x158] sm:$0xff]
    %v80 = vld [vmem:[%s0 + $0x160] sm:$0xff]
    %v81 = vld [vmem:[%s0 + $0x168] sm:$0xff]
    %v82 = vld [vmem:[%s0 + $0x170] sm:$0xff]
    %v83 = vld [vmem:[%s0 + $0x178] sm:$0xff]
    %v84 = vld [vmem:[%s0 + $0x180] sm:$0xff]
    %v85 = vld [vmem:[%s0 + $0x188] sm:$0xff]
    %v86 = vld [vmem:[%s0 + $0x190] sm:$0xff]
    %v87 = vld [vmem:[%s0 + $0x198] sm:$0xff]
    %v88 = vld [vmem:[%s0 + $0x1a0] sm:$0xff]
    %v89 = vld [vmem:[%s0 + $0x1a8] sm:$0xff]
    %v90 = vld [vmem:[%s0 + $0x1b0] sm:$0xff]
    %v91 = vld [vmem:[%s0 + $0x1b8] sm:$0xff]
    %v92 = vld [vmem:[%s0 + $0x1c0] sm:$0xff]
    %v93 = vld [vmem:[%s0 + $0x1c8] sm:$0xff]
    %v94 = vld [vmem:[%s0 + $0x1d0] sm:$0xff]
    %v95 = vld [vmem:[%s0 + $0x1d8] sm:$0xff]
    %v96 = vld [vmem:[%s0 + $0x1e0] sm:$0xff]
    %v97 = vld [vmem:[%s0 + $0x1e8] sm:$0xff]
    %v98 = vld [vmem:[%s0 + $0x1f0] sm:$0xff]
    %v99 = vld [vmem:[%s0 + $0x1f8] sm:$0xff]
    %v100 = vpack.c.bf16 %v37, %v36
    %v101 = vpack.c.bf16 %v39, %v38
    %v102 = vpack.c.bf16 %v41, %v40
    %v103 = vpack.c.bf16 %v43, %v42
    %v104 = vpack.c.bf16 %v45, %v44
    %v105 = vpack.c.bf16 %v47, %v46
    %v106 = vpack.c.bf16 %v49, %v48
    %v107 = vpack.c.bf16 %v51, %v50
    %v108 = vpack.c.bf16 %v53, %v52
    %v109 = vpack.c.bf16 %v55, %v54
    %v110 = vpack.c.bf16 %v57, %v56
    %v111 = vpack.c.bf16 %v59, %v58
    %v112 = vpack.c.bf16 %v61, %v60
    %v113 = vpack.c.bf16 %v63, %v62
    %v114 = vpack.c.bf16 %v65, %v64
    %v115 = vpack.c.bf16 %v67, %v66
    %v116 = vpack.c.bf16 %v69, %v68
    %v117 = vpack.c.bf16 %v71, %v70
    %v118 = vpack.c.bf16 %v73, %v72
    %v119 = vpack.c.bf16 %v75, %v74
    %v120 = vpack.c.bf16 %v77, %v76
    %v121 = vpack.c.bf16 %v79, %v78
    %v122 = vpack.c.bf16 %v81, %v80
    %v123 = vpack.c.bf16 %v83, %v82
    %v124 = vpack.c.bf16 %v85, %v84
    %v125 = vpack.c.bf16 %v87, %v86
    %v126 = vpack.c.bf16 %v89, %v88
    %v127 = vpack.c.bf16 %v91, %v90
    %v128 = vpack.c.bf16 %v93, %v92
    %v129 = vpack.c.bf16 %v95, %v94
    %v130 = vpack.c.bf16 %v97, %v96
    %v131 = vpack.c.bf16 %v99, %v98
    %v132 = vld [vmem:[%s1] sm:$0xff]
    %v133 = vld [vmem:[%s1 + $0x8] sm:$0xff]
    %v134 = vld [vmem:[%s1 + $0x10] sm:$0xff]
    %v135 = vld [vmem:[%s1 + $0x18] sm:$0xff]
    %v136 = vld [vmem:[%s1 + $0x20] sm:$0xff]
    %v137 = vld [vmem:[%s1 + $0x28] sm:$0xff]
    %v138 = vld [vmem:[%s1 + $0x30] sm:$0xff]
    %v139 = vld [vmem:[%s1 + $0x38] sm:$0xff]
    %v140 = vld [vmem:[%s1 + $0x40] sm:$0xff]
    %v141 = vld [vmem:[%s1 + $0x48] sm:$0xff]
    %v142 = vld [vmem:[%s1 + $0x50] sm:$0xff]
    %v143 = vld [vmem:[%s1 + $0x58] sm:$0xff]
    %v144 = vld [vmem:[%s1 + $0x60] sm:$0xff]
    %v145 = vld [vmem:[%s1 + $0x68] sm:$0xff]
    %v146 = vld [vmem:[%s1 + $0x70] sm:$0xff]
    %v147 = vld [vmem:[%s1 + $0x78] sm:$0xff]
    %v148 = vld [vmem:[%s1 + $0x80] sm:$0xff]
    %v149 = vld [vmem:[%s1 + $0x88] sm:$0xff]
    %v150 = vld [vmem:[%s1 + $0x90] sm:$0xff]
    %v151 = vld [vmem:[%s1 + $0x98] sm:$0xff]
    %v152 = vld [vmem:[%s1 + $0xa0] sm:$0xff]
    %v153 = vld [vmem:[%s1 + $0xa8] sm:$0xff]
    %v154 = vld [vmem:[%s1 + $0xb0] sm:$0xff]
    %v155 = vld [vmem:[%s1 + $0xb8] sm:$0xff]
    %v156 = vld [vmem:[%s1 + $0xc0] sm:$0xff]
    %v157 = vld [vmem:[%s1 + $0xc8] sm:$0xff]
    %v158 = vld [vmem:[%s1 + $0xd0] sm:$0xff]
    %v159 = vld [vmem:[%s1 + $0xd8] sm:$0xff]
    %v160 = vld [vmem:[%s1 + $0xe0] sm:$0xff]
    %v161 = vld [vmem:[%s1 + $0xe8] sm:$0xff]
    %v162 = vld [vmem:[%s1 + $0xf0] sm:$0xff]
    %v163 = vld [vmem:[%s1 + $0xf8] sm:$0xff]
    %v164 = vld [vmem:[%s2] sm:$0xff]
    %v165 = vld [vmem:[%s2 + $0x8] sm:$0xff]
    %v166 = vld [vmem:[%s2 + $0x10] sm:$0xff]
    %v167 = vld [vmem:[%s2 + $0x18] sm:$0xff]
    %v168 = vld [vmem:[%s2 + $0x20] sm:$0xff]
    %v169 = vld [vmem:[%s2 + $0x28] sm:$0xff]
    %v170 = vld [vmem:[%s2 + $0x30] sm:$0xff]
    %v171 = vld [vmem:[%s2 + $0x38] sm:$0xff]
    %v172 = vld [vmem:[%s2 + $0x40] sm:$0xff]
    %v173 = vld [vmem:[%s2 + $0x48] sm:$0xff]
    %v174 = vld [vmem:[%s2 + $0x50] sm:$0xff]
    %v175 = vld [vmem:[%s2 + $0x58] sm:$0xff]
    %v176 = vld [vmem:[%s2 + $0x60] sm:$0xff]
    %v177 = vld [vmem:[%s2 + $0x68] sm:$0xff]
    %v178 = vld [vmem:[%s2 + $0x70] sm:$0xff]
    %v179 = vld [vmem:[%s2 + $0x78] sm:$0xff]
    %v212 = vunpack.c.l.b16 %v132
    %v213 = vunpack.c.h.b16 %v132
    %v214 = vunpack.c.l.b16 %v133
    %v215 = vunpack.c.h.b16 %v133
    %v216 = vunpack.c.l.b16 %v134
    %v217 = vunpack.c.h.b16 %v134
    %v218 = vunpack.c.l.b16 %v135
    %v219 = vunpack.c.h.b16 %v135
    %v220 = vunpack.c.l.b16 %v136
    %v221 = vunpack.c.h.b16 %v136
    %v222 = vunpack.c.l.b16 %v137
    %v223 = vunpack.c.h.b16 %v137
    %v224 = vunpack.c.l.b16 %v138
    %v225 = vunpack.c.h.b16 %v138
    %v226 = vunpack.c.l.b16 %v139
    %v227 = vunpack.c.h.b16 %v139
    %v228 = vunpack.c.l.b16 %v140
    %v229 = vunpack.c.h.b16 %v140
    %v230 = vunpack.c.l.b16 %v141
    %v231 = vunpack.c.h.b16 %v141
    %v232 = vunpack.c.l.b16 %v142
    %v233 = vunpack.c.h.b16 %v142
    %v234 = vunpack.c.l.b16 %v143
    %v235 = vunpack.c.h.b16 %v143
    %v236 = vunpack.c.l.b16 %v144
    %v237 = vunpack.c.h.b16 %v144
    %v238 = vunpack.c.l.b16 %v145
    %v239 = vunpack.c.h.b16 %v145
    %v240 = vunpack.c.l.b16 %v146
    %v241 = vunpack.c.h.b16 %v146
    %v242 = vunpack.c.l.b16 %v147
    %v243 = vunpack.c.h.b16 %v147
    %v244 = vunpack.c.l.b16 %v148
    %v245 = vunpack.c.h.b16 %v148
    %v246 = vunpack.c.l.b16 %v149
    %v247 = vunpack.c.h.b16 %v149
    %v248 = vunpack.c.l.b16 %v150
    %v249 = vunpack.c.h.b16 %v150
    %v250 = vunpack.c.l.b16 %v151
    %v251 = vunpack.c.h.b16 %v151
    %v252 = vunpack.c.l.b16 %v152
    %v253 = vunpack.c.h.b16 %v152
    %v254 = vunpack.c.l.b16 %v153
    %v255 = vunpack.c.h.b16 %v153
    %v256 = vunpack.c.l.b16 %v154
    %v257 = vunpack.c.h.b16 %v154
    %v258 = vunpack.c.l.b16 %v155
    %v259 = vunpack.c.h.b16 %v155
    %v260 = vunpack.c.l.b16 %v156
    %v261 = vunpack.c.h.b16 %v156
    %v262 = vunpack.c.l.b16 %v157
    %v263 = vunpack.c.h.b16 %v157
    %v264 = vunpack.c.l.b16 %v158
    %v265 = vunpack.c.h.b16 %v158
    %v266 = vunpack.c.l.b16 %v159
    %v267 = vunpack.c.h.b16 %v159
    %v268 = vunpack.c.l.b16 %v160
    %v269 = vunpack.c.h.b16 %v160
    %v270 = vunpack.c.l.b16 %v161
    %v271 = vunpack.c.h.b16 %v161
    %v272 = vunpack.c.l.b16 %v162
    %v273 = vunpack.c.h.b16 %v162
    %v274 = vunpack.c.l.b16 %v163
    %v275 = vunpack.c.h.b16 %v163
    %v276 = vpack.c.b16 %v216, %v212
    %v277 = vpack.c.b16 %v217, %v213
    %v278 = vpack.c.b16 %v218, %v214
    %v279 = vpack.c.b16 %v219, %v215
    %v280 = vpack.c.b16 %v224, %v220
    %v281 = vpack.c.b16 %v225, %v221
    %v282 = vpack.c.b16 %v226, %v222
    %v283 = vpack.c.b16 %v227, %v223
    %v284 = vpack.c.b16 %v232, %v228
    %v285 = vpack.c.b16 %v233, %v229
    %v286 = vpack.c.b16 %v234, %v230
    %v287 = vpack.c.b16 %v235, %v231
    %v288 = vpack.c.b16 %v240, %v236
    %v289 = vpack.c.b16 %v241, %v237
    %v290 = vpack.c.b16 %v242, %v238
    %v291 = vpack.c.b16 %v243, %v239
    %v292 = vpack.c.b16 %v248, %v244
    %v293 = vpack.c.b16 %v249, %v245
    %v294 = vpack.c.b16 %v250, %v246
    %v295 = vpack.c.b16 %v251, %v247
    %v296 = vpack.c.b16 %v256, %v252
    %v297 = vpack.c.b16 %v257, %v253
    %v298 = vpack.c.b16 %v258, %v254
    %v299 = vpack.c.b16 %v259, %v255
    %v300 = vpack.c.b16 %v264, %v260
    %v301 = vpack.c.b16 %v265, %v261
    %v302 = vpack.c.b16 %v266, %v262
    %v303 = vpack.c.b16 %v267, %v263
    %v304 = vpack.c.b16 %v272, %v268
    %v305 = vpack.c.b16 %v273, %v269
    %v306 = vpack.c.b16 %v274, %v270
    %v307 = vpack.c.b16 %v275, %v271
    %340 = vmatpush.bf16.msra.mxu0 %v107
    %341 = vmatpush.bf16.msra.mxu0 %v106
    %342 = vmatpush.bf16.msra.mxu0 %v105
    %343 = vmatpush.bf16.msra.mxu0 %v104
    %344 = vmatpush.bf16.msra.mxu0 %v103
    %345 = vmatpush.bf16.msra.mxu0 %v102
    %346 = vmatpush.bf16.msra.mxu0 %v101
    %347 = vmatpush.bf16.msra.mxu0 %v100
    %348 = vmatmul.bf16.gmra.mxu0 %v276
    %v349 = vpop.f32.mrf.mxu0
    %v350 = vadd.f32 %v164, %v349
    %v351 = vpop.f32.mrf.mxu0
    %v352 = vadd.f32 %v165, %v351
    %353 = vmatmul.bf16.gmra.mxu0 %v280
    %v354 = vpop.f32.mrf.mxu0
    %v355 = vadd.f32 %v166, %v354
    %v356 = vpop.f32.mrf.mxu0
    %v357 = vadd.f32 %v167, %v356
    %358 = vmatmul.bf16.gmra.mxu0 %v284
    %v359 = vpop.f32.mrf.mxu0
    %v360 = vadd.f32 %v168, %v359
    %v361 = vpop.f32.mrf.mxu0
    %v362 = vadd.f32 %v169, %v361
    %363 = vmatmul.bf16.gmra.mxu0 %v288
    %v364 = vpop.f32.mrf.mxu0
    %v365 = vadd.f32 %v170, %v364
    %v366 = vpop.f32.mrf.mxu0
    %v367 = vadd.f32 %v171, %v366
    %368 = vmatmul.bf16.gmra.mxu0 %v292
    %v369 = vpop.f32.mrf.mxu0
    %v370 = vadd.f32 %v172, %v369
    %v371 = vpop.f32.mrf.mxu0
    %v372 = vadd.f32 %v173, %v371
    %373 = vmatmul.bf16.gmra.mxu0 %v296
    %v374 = vpop.f32.mrf.mxu0
    %v375 = vadd.f32 %v174, %v374
    %v376 = vpop.f32.mrf.mxu0
    %v377 = vadd.f32 %v175, %v376
    %378 = vmatmul.bf16.gmra.mxu0 %v300
    %v379 = vpop.f32.mrf.mxu0
    %v380 = vadd.f32 %v176, %v379
    %v381 = vpop.f32.mrf.mxu0
    %v382 = vadd.f32 %v177, %v381
    %383 = vmatmul.bf16.gmra.mxu0 %v304
    %v384 = vpop.f32.mrf.mxu0
    %v385 = vadd.f32 %v178, %v384
    %v386 = vpop.f32.mrf.mxu0
    %v387 = vadd.f32 %v179, %v386
    %388 = vdwg.mxu0
    %389 = vmatpush.bf16.msra.mxu0 %v115
    %390 = vmatpush.bf16.msra.mxu0 %v114
    %391 = vmatpush.bf16.msra.mxu0 %v113
    %392 = vmatpush.bf16.msra.mxu0 %v112
    %393 = vmatpush.bf16.msra.mxu0 %v111
    %394 = vmatpush.bf16.msra.mxu0 %v110
    %395 = vmatpush.bf16.msra.mxu0 %v109
    %396 = vmatpush.bf16.msra.mxu0 %v108
    %397 = vmatmul.bf16.gmra.mxu0 %v277
    %v398 = vpop.f32.mrf.mxu0
    %v399 = vadd.f32 %v350, %v398
    %v400 = vpop.f32.mrf.mxu0
    %v401 = vadd.f32 %v352, %v400
    %402 = vmatmul.bf16.gmra.mxu0 %v281
    %v403 = vpop.f32.mrf.mxu0
    %v404 = vadd.f32 %v355, %v403
    %v405 = vpop.f32.mrf.mxu0
    %v406 = vadd.f32 %v357, %v405
    %407 = vmatmul.bf16.gmra.mxu0 %v285
    %v408 = vpop.f32.mrf.mxu0
    %v409 = vadd.f32 %v360, %v408
    %v410 = vpop.f32.mrf.mxu0
    %v411 = vadd.f32 %v362, %v410
    %412 = vmatmul.bf16.gmra.mxu0 %v289
    %v413 = vpop.f32.mrf.mxu0
    %v414 = vadd.f32 %v365, %v413
    %v415 = vpop.f32.mrf.mxu0
    %v416 = vadd.f32 %v367, %v415
    %417 = vmatmul.bf16.gmra.mxu0 %v293
    %v418 = vpop.f32.mrf.mxu0
    %v419 = vadd.f32 %v370, %v418
    %v420 = vpop.f32.mrf.mxu0
    %v421 = vadd.f32 %v372, %v420
    %422 = vmatmul.bf16.gmra.mxu0 %v297
    %v423 = vpop.f32.mrf.mxu0
    %v424 = vadd.f32 %v375, %v423
    %v425 = vpop.f32.mrf.mxu0
    %v426 = vadd.f32 %v377, %v425
    %427 = vmatmul.bf16.gmra.mxu0 %v301
    %v428 = vpop.f32.mrf.mxu0
    %v429 = vadd.f32 %v380, %v428
    %v430 = vpop.f32.mrf.mxu0
    %v431 = vadd.f32 %v382, %v430
    %432 = vmatmul.bf16.gmra.mxu0 %v305
    %v433 = vpop.f32.mrf.mxu0
    %v434 = vadd.f32 %v385, %v433
    %v435 = vpop.f32.mrf.mxu0
    %v436 = vadd.f32 %v387, %v435
    %437 = vdwg.mxu0
    %438 = vmatpush.bf16.msra.mxu0 %v123
    %439 = vmatpush.bf16.msra.mxu0 %v122
    %440 = vmatpush.bf16.msra.mxu0 %v121
    %441 = vmatpush.bf16.msra.mxu0 %v120
    %442 = vmatpush.bf16.msra.mxu0 %v119
    %443 = vmatpush.bf16.msra.mxu0 %v118
    %444 = vmatpush.bf16.msra.mxu0 %v117
    %445 = vmatpush.bf16.msra.mxu0 %v116
    %446 = vmatmul.bf16.gmra.mxu0 %v278
    %v447 = vpop.f32.mrf.mxu0
    %v448 = vadd.f32 %v399, %v447
    %v449 = vpop.f32.mrf.mxu0
    %v450 = vadd.f32 %v401, %v449
    %451 = vmatmul.bf16.gmra.mxu0 %v282
    %v452 = vpop.f32.mrf.mxu0
    %v453 = vadd.f32 %v404, %v452
    %v454 = vpop.f32.mrf.mxu0
    %v455 = vadd.f32 %v406, %v454
    %456 = vmatmul.bf16.gmra.mxu0 %v286
    %v457 = vpop.f32.mrf.mxu0
    %v458 = vadd.f32 %v409, %v457
    %v459 = vpop.f32.mrf.mxu0
    %v460 = vadd.f32 %v411, %v459
    %461 = vmatmul.bf16.gmra.mxu0 %v290
    %v462 = vpop.f32.mrf.mxu0
    %v463 = vadd.f32 %v414, %v462
    %v464 = vpop.f32.mrf.mxu0
    %v465 = vadd.f32 %v416, %v464
    %466 = vmatmul.bf16.gmra.mxu0 %v294
    %v467 = vpop.f32.mrf.mxu0
    %v468 = vadd.f32 %v419, %v467
    %v469 = vpop.f32.mrf.mxu0
    %v470 = vadd.f32 %v421, %v469
    %471 = vmatmul.bf16.gmra.mxu0 %v298
    %v472 = vpop.f32.mrf.mxu0
    %v473 = vadd.f32 %v424, %v472
    %v474 = vpop.f32.mrf.mxu0
    %v475 = vadd.f32 %v426, %v474
    %476 = vmatmul.bf16.gmra.mxu0 %v302
    %v477 = vpop.f32.mrf.mxu0
    %v478 = vadd.f32 %v429, %v477
    %v479 = vpop.f32.mrf.mxu0
    %v480 = vadd.f32 %v431, %v479
    %481 = vmatmul.bf16.gmra.mxu0 %v306
    %v482 = vpop.f32.mrf.mxu0
    %v483 = vadd.f32 %v434, %v482
    %v484 = vpop.f32.mrf.mxu0
    %v485 = vadd.f32 %v436, %v484
    %486 = vdwg.mxu0
    %487 = vmatpush.bf16.msra.mxu0 %v131
    %488 = vmatpush.bf16.msra.mxu0 %v130
    %489 = vmatpush.bf16.msra.mxu0 %v129
    %490 = vmatpush.bf16.msra.mxu0 %v128
    %491 = vmatpush.bf16.msra.mxu0 %v127
    %492 = vmatpush.bf16.msra.mxu0 %v126
    %493 = vmatpush.bf16.msra.mxu0 %v125
    %494 = vmatpush.bf16.msra.mxu0 %v124
    %495 = vmatmul.bf16.gmra.mxu0 %v279
    %v496 = vpop.f32.mrf.mxu0
    %v497 = vadd.f32 %v448, %v496
    %v498 = vpop.f32.mrf.mxu0
    %v499 = vadd.f32 %v450, %v498
    %500 = vmatmul.bf16.gmra.mxu0 %v283
    %v501 = vpop.f32.mrf.mxu0
    %v502 = vadd.f32 %v453, %v501
    %v503 = vpop.f32.mrf.mxu0
    %v504 = vadd.f32 %v455, %v503
    %505 = vmatmul.bf16.gmra.mxu0 %v287
    %v506 = vpop.f32.mrf.mxu0
    %v507 = vadd.f32 %v458, %v506
    %v508 = vpop.f32.mrf.mxu0
    %v509 = vadd.f32 %v460, %v508
    %510 = vmatmul.bf16.gmra.mxu0 %v291
    %v511 = vpop.f32.mrf.mxu0
    %v512 = vadd.f32 %v463, %v511
    %v513 = vpop.f32.mrf.mxu0
    %v514 = vadd.f32 %v465, %v513
    %515 = vmatmul.bf16.gmra.mxu0 %v295
    %v516 = vpop.f32.mrf.mxu0
    %v517 = vadd.f32 %v468, %v516
    %v518 = vpop.f32.mrf.mxu0
    %v519 = vadd.f32 %v470, %v518
    %520 = vmatmul.bf16.gmra.mxu0 %v299
    %v521 = vpop.f32.mrf.mxu0
    %v522 = vadd.f32 %v473, %v521
    %v523 = vpop.f32.mrf.mxu0
    %v524 = vadd.f32 %v475, %v523
    %525 = vmatmul.bf16.gmra.mxu0 %v303
    %v526 = vpop.f32.mrf.mxu0
    %v527 = vadd.f32 %v478, %v526
    %v528 = vpop.f32.mrf.mxu0
    %v529 = vadd.f32 %v480, %v528
    %530 = vmatmul.bf16.gmra.mxu0 %v307
    %v531 = vpop.f32.mrf.mxu0
    %v532 = vadd.f32 %v483, %v531
    %v533 = vpop.f32.mrf.mxu0
    %v534 = vadd.f32 %v485, %v533
    %535 = vdwg.mxu0
    %v536 = vmax.f32 %v497, 0.0
    %v537 = vmax.f32 %v499, 0.0
    %v538 = vmax.f32 %v502, 0.0
    %v539 = vmax.f32 %v504, 0.0
    %v540 = vmax.f32 %v507, 0.0
    %v541 = vmax.f32 %v509, 0.0
    %v542 = vmax.f32 %v512, 0.0
    %v543 = vmax.f32 %v514, 0.0
    %v544 = vmax.f32 %v517, 0.0
    %v545 = vmax.f32 %v519, 0.0
    %v546 = vmax.f32 %v522, 0.0
    %v547 = vmax.f32 %v524, 0.0
    %v548 = vmax.f32 %v527, 0.0
    %v549 = vmax.f32 %v529, 0.0
    %v550 = vmax.f32 %v532, 0.0
    %v551 = vmax.f32 %v534, 0.0
    %v552 = vld [vmem:[#allocation2] sm:$0xf]
    %v553 = vld [vmem:[#allocation2 + $0x4] sm:$0xf]
    %v554 = vld [vmem:[#allocation2 + $0x8] sm:$0xf]
    %v555 = vld [vmem:[#allocation2 + $0xc] sm:$0xf]
    %v556 = vld [vmem:[#allocation2 + $0x10] sm:$0xf]
    %v557 = vld [vmem:[#allocation2 + $0x14] sm:$0xf]
    %v558 = vld [vmem:[#allocation2 + $0x18] sm:$0xf]
    %v559 = vld [vmem:[#allocation2 + $0x1c] sm:$0xf]
    %v560 = vld [vmem:[#allocation2 + $0x20] sm:$0xf]
    %v561 = vld [vmem:[#allocation2 + $0x24] sm:$0xf]
    %v562 = vld [vmem:[#allocation2 + $0x28] sm:$0xf]
    %v563 = vld [vmem:[#allocation2 + $0x2c] sm:$0xf]
    %v564 = vld [vmem:[#allocation2 + $0x30] sm:$0xf]
    %v565 = vld [vmem:[#allocation2 + $0x34] sm:$0xf]
    %v566 = vld [vmem:[#allocation2 + $0x38] sm:$0xf]
    %v567 = vld [vmem:[#allocation2 + $0x3c] sm:$0xf]
    %v568 = vld [vmem:[#allocation2 + $0x40] sm:$0xf]
    %v569 = vld [vmem:[#allocation2 + $0x44] sm:$0xf]
    %v570 = vld [vmem:[#allocation2 + $0x48] sm:$0xf]
    %v571 = vld [vmem:[#allocation2 + $0x4c] sm:$0xf]
    %v572 = vld [vmem:[#allocation2 + $0x50] sm:$0xf]
    %v573 = vld [vmem:[#allocation2 + $0x54] sm:$0xf]
    %v574 = vld [vmem:[#allocation2 + $0x58] sm:$0xf]
    %v575 = vld [vmem:[#allocation2 + $0x5c] sm:$0xf]
    %v576 = vld [vmem:[#allocation2 + $0x60] sm:$0xf]
    %v577 = vld [vmem:[#allocation2 + $0x64] sm:$0xf]
    %v578 = vld [vmem:[#allocation2 + $0x68] sm:$0xf]
    %v579 = vld [vmem:[#allocation2 + $0x6c] sm:$0xf]
    %v580 = vld [vmem:[#allocation2 + $0x70] sm:$0xf]
    %v581 = vld [vmem:[#allocation2 + $0x74] sm:$0xf]
    %v582 = vld [vmem:[#allocation2 + $0x78] sm:$0xf]
    %v583 = vld [vmem:[#allocation2 + $0x7c] sm:$0xf]
    %v584 = vld [vmem:[#allocation2 + $0x80] sm:$0xf]
    %v585 = vld [vmem:[#allocation2 + $0x84] sm:$0xf]
    %v586 = vld [vmem:[#allocation2 + $0x88] sm:$0xf]
    %v587 = vld [vmem:[#allocation2 + $0x8c] sm:$0xf]
    %v588 = vld [vmem:[#allocation2 + $0x90] sm:$0xf]
    %v589 = vld [vmem:[#allocation2 + $0x94] sm:$0xf]
    %v590 = vld [vmem:[#allocation2 + $0x98] sm:$0xf]
    %v591 = vld [vmem:[#allocation2 + $0x9c] sm:$0xf]
    %v592 = vld [vmem:[#allocation2 + $0xa0] sm:$0xf]
    %v593 = vld [vmem:[#allocation2 + $0xa4] sm:$0xf]
    %v594 = vld [vmem:[#allocation2 + $0xa8] sm:$0xf]
    %v595 = vld [vmem:[#allocation2 + $0xac] sm:$0xf]
    %v596 = vld [vmem:[#allocation2 + $0xb0] sm:$0xf]
    %v597 = vld [vmem:[#allocation2 + $0xb4] sm:$0xf]
    %v598 = vld [vmem:[#allocation2 + $0xb8] sm:$0xf]
    %v599 = vld [vmem:[#allocation2 + $0xbc] sm:$0xf]
    %v600 = vld [vmem:[#allocation2 + $0xc0] sm:$0xf]
    %v601 = vld [vmem:[#allocation2 + $0xc4] sm:$0xf]
    %v602 = vld [vmem:[#allocation2 + $0xc8] sm:$0xf]
    %v603 = vld [vmem:[#allocation2 + $0xcc] sm:$0xf]
    %v604 = vld [vmem:[#allocation2 + $0xd0] sm:$0xf]
    %v605 = vld [vmem:[#allocation2 + $0xd4] sm:$0xf]
    %v606 = vld [vmem:[#allocation2 + $0xd8] sm:$0xf]
    %v607 = vld [vmem:[#allocation2 + $0xdc] sm:$0xf]
    %v608 = vld [vmem:[#allocation2 + $0xe0] sm:$0xf]
    %v609 = vld [vmem:[#allocation2 + $0xe4] sm:$0xf]
    %v610 = vld [vmem:[#allocation2 + $0xe8] sm:$0xf]
    %v611 = vld [vmem:[#allocation2 + $0xec] sm:$0xf]
    %v612 = vld [vmem:[#allocation2 + $0xf0] sm:$0xf]
    %v613 = vld [vmem:[#allocation2 + $0xf4] sm:$0xf]
    %v614 = vld [vmem:[#allocation2 + $0xf8] sm:$0xf]
    %v615 = vld [vmem:[#allocation2 + $0xfc] sm:$0xf]
    %v616 = vpack.c.bf16 %v537, %v536
    %v617 = vpack.c.bf16 %v539, %v538
    %v618 = vpack.c.bf16 %v541, %v540
    %v619 = vpack.c.bf16 %v543, %v542
    %v620 = vpack.c.bf16 %v545, %v544
    %v621 = vpack.c.bf16 %v547, %v546
    %v622 = vpack.c.bf16 %v549, %v548
    %v623 = vpack.c.bf16 %v551, %v550
    %v624 = vld [vmem:[%s4] sm:$0xff]
    %v625 = vld [vmem:[%s4 + $0x8] sm:$0xff]
    %v626 = vld [vmem:[%s4 + $0x10] sm:$0xff]
    %v627 = vld [vmem:[%s4 + $0x18] sm:$0xff]
    %v628 = vld [vmem:[%s4 + $0x20] sm:$0xff]
    %v629 = vld [vmem:[%s4 + $0x28] sm:$0xff]
    %v630 = vld [vmem:[%s4 + $0x30] sm:$0xff]
    %v631 = vld [vmem:[%s4 + $0x38] sm:$0xff]
    %v632 = vld [vmem:[%s4 + $0x40] sm:$0xff]
    %v633 = vld [vmem:[%s4 + $0x48] sm:$0xff]
    %v634 = vld [vmem:[%s4 + $0x50] sm:$0xff]
    %v635 = vld [vmem:[%s4 + $0x58] sm:$0xff]
    %v636 = vld [vmem:[%s4 + $0x60] sm:$0xff]
    %v637 = vld [vmem:[%s4 + $0x68] sm:$0xff]
    %v638 = vld [vmem:[%s4 + $0x70] sm:$0xff]
    %v639 = vld [vmem:[%s4 + $0x78] sm:$0xff]
    %v640 = vld [vmem:[%s4 + $0x80] sm:$0xff]
    %v641 = vld [vmem:[%s4 + $0x88] sm:$0xff]
    %v642 = vld [vmem:[%s4 + $0x90] sm:$0xff]
    %v643 = vld [vmem:[%s4 + $0x98] sm:$0xff]
    %v644 = vld [vmem:[%s4 + $0xa0] sm:$0xff]
    %v645 = vld [vmem:[%s4 + $0xa8] sm:$0xff]
    %v646 = vld [vmem:[%s4 + $0xb0] sm:$0xff]
    %v647 = vld [vmem:[%s4 + $0xb8] sm:$0xff]
    %v648 = vld [vmem:[%s4 + $0xc0] sm:$0xff]
    %v649 = vld [vmem:[%s4 + $0xc8] sm:$0xff]
    %v650 = vld [vmem:[%s4 + $0xd0] sm:$0xff]
    %v651 = vld [vmem:[%s4 + $0xd8] sm:$0xff]
    %v652 = vld [vmem:[%s4 + $0xe0] sm:$0xff]
    %v653 = vld [vmem:[%s4 + $0xe8] sm:$0xff]
    %v654 = vld [vmem:[%s4 + $0xf0] sm:$0xff]
    %v655 = vld [vmem:[%s4 + $0xf8] sm:$0xff]
    %v656 = vld [vmem:[%s4 + $0x100] sm:$0xff]
    %v657 = vld [vmem:[%s4 + $0x108] sm:$0xff]
    %v658 = vld [vmem:[%s4 + $0x110] sm:$0xff]
    %v659 = vld [vmem:[%s4 + $0x118] sm:$0xff]
    %v660 = vld [vmem:[%s4 + $0x120] sm:$0xff]
    %v661 = vld [vmem:[%s4 + $0x128] sm:$0xff]
    %v662 = vld [vmem:[%s4 + $0x130] sm:$0xff]
    %v663 = vld [vmem:[%s4 + $0x138] sm:$0xff]
    %v664 = vld [vmem:[%s4 + $0x140] sm:$0xff]
    %v665 = vld [vmem:[%s4 + $0x148] sm:$0xff]
    %v666 = vld [vmem:[%s4 + $0x150] sm:$0xff]
    %v667 = vld [vmem:[%s4 + $0x158] sm:$0xff]
    %v668 = vld [vmem:[%s4 + $0x160] sm:$0xff]
    %v669 = vld [vmem:[%s4 + $0x168] sm:$0xff]
    %v670 = vld [vmem:[%s4 + $0x170] sm:$0xff]
    %v671 = vld [vmem:[%s4 + $0x178] sm:$0xff]
    %v672 = vld [vmem:[%s4 + $0x180] sm:$0xff]
    %v673 = vld [vmem:[%s4 + $0x188] sm:$0xff]
    %v674 = vld [vmem:[%s4 + $0x190] sm:$0xff]
    %v675 = vld [vmem:[%s4 + $0x198] sm:$0xff]
    %v676 = vld [vmem:[%s4 + $0x1a0] sm:$0xff]
    %v677 = vld [vmem:[%s4 + $0x1a8] sm:$0xff]
    %v678 = vld [vmem:[%s4 + $0x1b0] sm:$0xff]
    %v679 = vld [vmem:[%s4 + $0x1b8] sm:$0xff]
    %v680 = vld [vmem:[%s4 + $0x1c0] sm:$0xff]
    %v681 = vld [vmem:[%s4 + $0x1c8] sm:$0xff]
    %v682 = vld [vmem:[%s4 + $0x1d0] sm:$0xff]
    %v683 = vld [vmem:[%s4 + $0x1d8] sm:$0xff]
    %v684 = vld [vmem:[%s4 + $0x1e0] sm:$0xff]
    %v685 = vld [vmem:[%s4 + $0x1e8] sm:$0xff]
    %v686 = vld [vmem:[%s4 + $0x1f0] sm:$0xff]
    %v687 = vld [vmem:[%s4 + $0x1f8] sm:$0xff]
    %v752 = vunpack.c.l.b16 %v552
    %v753 = vunpack.c.l.b16 %v553
    %v754 = vunpack.c.l.b16 %v554
    %v755 = vunpack.c.l.b16 %v555
    %v756 = vunpack.c.l.b16 %v556
    %v757 = vunpack.c.l.b16 %v557
    %v758 = vunpack.c.l.b16 %v558
    %v759 = vunpack.c.l.b16 %v559
    %v760 = vunpack.c.l.b16 %v560
    %v761 = vunpack.c.l.b16 %v561
    %v762 = vunpack.c.l.b16 %v562
    %v763 = vunpack.c.l.b16 %v563
    %v764 = vunpack.c.l.b16 %v564
    %v765 = vunpack.c.l.b16 %v565
    %v766 = vunpack.c.l.b16 %v566
    %v767 = vunpack.c.l.b16 %v567
    %v768 = vunpack.c.l.b16 %v568
    %v769 = vunpack.c.l.b16 %v569
    %v770 = vunpack.c.l.b16 %v570
    %v771 = vunpack.c.l.b16 %v571
    %v772 = vunpack.c.l.b16 %v572
    %v773 = vunpack.c.l.b16 %v573
    %v774 = vunpack.c.l.b16 %v574
    %v775 = vunpack.c.l.b16 %v575
    %v776 = vunpack.c.l.b16 %v576
    %v777 = vunpack.c.l.b16 %v577
    %v778 = vunpack.c.l.b16 %v578
    %v779 = vunpack.c.l.b16 %v579
    %v780 = vunpack.c.l.b16 %v580
    %v781 = vunpack.c.l.b16 %v581
    %v782 = vunpack.c.l.b16 %v582
    %v783 = vunpack.c.l.b16 %v583
    %v784 = vunpack.c.l.b16 %v584
    %v785 = vunpack.c.l.b16 %v585
    %v786 = vunpack.c.l.b16 %v586
    %v787 = vunpack.c.l.b16 %v587
    %v788 = vunpack.c.l.b16 %v588
    %v789 = vunpack.c.l.b16 %v589
    %v790 = vunpack.c.l.b16 %v590
    %v791 = vunpack.c.l.b16 %v591
    %v792 = vunpack.c.l.b16 %v592
    %v793 = vunpack.c.l.b16 %v593
    %v794 = vunpack.c.l.b16 %v594
    %v795 = vunpack.c.l.b16 %v595
    %v796 = vunpack.c.l.b16 %v596
    %v797 = vunpack.c.l.b16 %v597
    %v798 = vunpack.c.l.b16 %v598
    %v799 = vunpack.c.l.b16 %v599
    %v800 = vunpack.c.l.b16 %v600
    %v801 = vunpack.c.l.b16 %v601
    %v802 = vunpack.c.l.b16 %v602
    %v803 = vunpack.c.l.b16 %v603
    %v804 = vunpack.c.l.b16 %v604
    %v805 = vunpack.c.l.b16 %v605
    %v806 = vunpack.c.l.b16 %v606
    %v807 = vunpack.c.l.b16 %v607
    %v808 = vunpack.c.l.b16 %v608
    %v809 = vunpack.c.l.b16 %v609
    %v810 = vunpack.c.l.b16 %v610
    %v811 = vunpack.c.l.b16 %v611
    %v812 = vunpack.c.l.b16 %v612
    %v813 = vunpack.c.l.b16 %v613
    %v814 = vunpack.c.l.b16 %v614
    %v815 = vunpack.c.l.b16 %v615
    %v816 = vpack.c.b16 %v753, %v752
    %v817 = vpack.c.b16 %v755, %v754
    %v818 = vpack.c.b16 %v757, %v756
    %v819 = vpack.c.b16 %v759, %v758
    %v820 = vpack.c.b16 %v761, %v760
    %v821 = vpack.c.b16 %v763, %v762
    %v822 = vpack.c.b16 %v765, %v764
    %v823 = vpack.c.b16 %v767, %v766
    %v824 = vpack.c.b16 %v769, %v768
    %v825 = vpack.c.b16 %v771, %v770
    %v826 = vpack.c.b16 %v773, %v772
    %v827 = vpack.c.b16 %v775, %v774
    %v828 = vpack.c.b16 %v777, %v776
    %v829 = vpack.c.b16 %v779, %v778
    %v830 = vpack.c.b16 %v781, %v780
    %v831 = vpack.c.b16 %v783, %v782
    %v832 = vpack.c.b16 %v785, %v784
    %v833 = vpack.c.b16 %v787, %v786
    %v834 = vpack.c.b16 %v789, %v788
    %v835 = vpack.c.b16 %v791, %v790
    %v836 = vpack.c.b16 %v793, %v792
    %v837 = vpack.c.b16 %v795, %v794
    %v838 = vpack.c.b16 %v797, %v796
    %v839 = vpack.c.b16 %v799, %v798
    %v840 = vpack.c.b16 %v801, %v800
    %v841 = vpack.c.b16 %v803, %v802
    %v842 = vpack.c.b16 %v805, %v804
    %v843 = vpack.c.b16 %v807, %v806
    %v844 = vpack.c.b16 %v809, %v808
    %v845 = vpack.c.b16 %v811, %v810
    %v846 = vpack.c.b16 %v813, %v812
    %v847 = vpack.c.b16 %v815, %v814
    %880 = vmatpush.bf16.msra.mxu0 %v623
    %881 = vmatpush.bf16.msra.mxu0 %v622
    %882 = vmatpush.bf16.msra.mxu0 %v621
    %883 = vmatpush.bf16.msra.mxu0 %v620
    %884 = vmatpush.bf16.msra.mxu0 %v619
    %885 = vmatpush.bf16.msra.mxu0 %v618
    %886 = vmatpush.bf16.msra.mxu0 %v617
    %887 = vmatpush.bf16.msra.mxu0 %v616
    %888 = vmatmul.bf16.gmra.mxu0 %v816
    %v889 = vpop.f32.mrf.mxu0
    %v890 = vadd.f32 %v624, %v889
    %v891 = vpop.f32.mrf.mxu0
    %v892 = vadd.f32 %v625, %v891
    %893 = vmatmul.bf16.gmra.mxu0 %v817
    %v894 = vpop.f32.mrf.mxu0
    %v895 = vadd.f32 %v626, %v894
    %v896 = vpop.f32.mrf.mxu0
    %v897 = vadd.f32 %v627, %v896
    %898 = vmatmul.bf16.gmra.mxu0 %v818
    %v899 = vpop.f32.mrf.mxu0
    %v900 = vadd.f32 %v628, %v899
    %v901 = vpop.f32.mrf.mxu0
    %v902 = vadd.f32 %v629, %v901
    %903 = vmatmul.bf16.gmra.mxu0 %v819
    %v904 = vpop.f32.mrf.mxu0
    %v905 = vadd.f32 %v630, %v904
    %v906 = vpop.f32.mrf.mxu0
    %v907 = vadd.f32 %v631, %v906
    %908 = vmatmul.bf16.gmra.mxu0 %v820
    %v909 = vpop.f32.mrf.mxu0
    %v910 = vadd.f32 %v632, %v909
    %v911 = vpop.f32.mrf.mxu0
    %v912 = vadd.f32 %v633, %v911
    %913 = vmatmul.bf16.gmra.mxu0 %v821
    %v914 = vpop.f32.mrf.mxu0
    %v915 = vadd.f32 %v634, %v914
    %v916 = vpop.f32.mrf.mxu0
    %v917 = vadd.f32 %v635, %v916
    %918 = vmatmul.bf16.gmra.mxu0 %v822
    %v919 = vpop.f32.mrf.mxu0
    %v920 = vadd.f32 %v636, %v919
    %v921 = vpop.f32.mrf.mxu0
    %v922 = vadd.f32 %v637, %v921
    %923 = vmatmul.bf16.gmra.mxu0 %v823
    %v924 = vpop.f32.mrf.mxu0
    %v925 = vadd.f32 %v638, %v924
    %v926 = vpop.f32.mrf.mxu0
    %v927 = vadd.f32 %v639, %v926
    %928 = vmatmul.bf16.gmra.mxu0 %v824
    %v929 = vpop.f32.mrf.mxu0
    %v930 = vadd.f32 %v640, %v929
    %v931 = vpop.f32.mrf.mxu0
    %v932 = vadd.f32 %v641, %v931
    %933 = vmatmul.bf16.gmra.mxu0 %v825
    %v934 = vpop.f32.mrf.mxu0
    %v935 = vadd.f32 %v642, %v934
    %v936 = vpop.f32.mrf.mxu0
    %v937 = vadd.f32 %v643, %v936
    %938 = vmatmul.bf16.gmra.mxu0 %v826
    %v939 = vpop.f32.mrf.mxu0
    %v940 = vadd.f32 %v644, %v939
    %v941 = vpop.f32.mrf.mxu0
    %v942 = vadd.f32 %v645, %v941
    %943 = vmatmul.bf16.gmra.mxu0 %v827
    %v944 = vpop.f32.mrf.mxu0
    %v945 = vadd.f32 %v646, %v944
    %v946 = vpop.f32.mrf.mxu0
    %v947 = vadd.f32 %v647, %v946
    %948 = vmatmul.bf16.gmra.mxu0 %v828
    %v949 = vpop.f32.mrf.mxu0
    %v950 = vadd.f32 %v648, %v949
    %v951 = vpop.f32.mrf.mxu0
    %v952 = vadd.f32 %v649, %v951
    %953 = vmatmul.bf16.gmra.mxu0 %v829
    %v954 = vpop.f32.mrf.mxu0
    %v955 = vadd.f32 %v650, %v954
    %v956 = vpop.f32.mrf.mxu0
    %v957 = vadd.f32 %v651, %v956
    %958 = vmatmul.bf16.gmra.mxu0 %v830
    %v959 = vpop.f32.mrf.mxu0
    %v960 = vadd.f32 %v652, %v959
    %v961 = vpop.f32.mrf.mxu0
    %v962 = vadd.f32 %v653, %v961
    %963 = vmatmul.bf16.gmra.mxu0 %v831
    %v964 = vpop.f32.mrf.mxu0
    %v965 = vadd.f32 %v654, %v964
    %v966 = vpop.f32.mrf.mxu0
    %v967 = vadd.f32 %v655, %v966
    %968 = vmatmul.bf16.gmra.mxu0 %v832
    %v969 = vpop.f32.mrf.mxu0
    %v970 = vadd.f32 %v656, %v969
    %v971 = vpop.f32.mrf.mxu0
    %v972 = vadd.f32 %v657, %v971
    %973 = vmatmul.bf16.gmra.mxu0 %v833
    %v974 = vpop.f32.mrf.mxu0
    %v975 = vadd.f32 %v658, %v974
    %v976 = vpop.f32.mrf.mxu0
    %v977 = vadd.f32 %v659, %v976
    %978 = vmatmul.bf16.gmra.mxu0 %v834
    %v979 = vpop.f32.mrf.mxu0
    %v980 = vadd.f32 %v660, %v979
    %v981 = vpop.f32.mrf.mxu0
    %v982 = vadd.f32 %v661, %v981
    %983 = vmatmul.bf16.gmra.mxu0 %v835
    %v984 = vpop.f32.mrf.mxu0
    %v985 = vadd.f32 %v662, %v984
    %v986 = vpop.f32.mrf.mxu0
    %v987 = vadd.f32 %v663, %v986
    %988 = vmatmul.bf16.gmra.mxu0 %v836
    %v989 = vpop.f32.mrf.mxu0
    %v990 = vadd.f32 %v664, %v989
    %v991 = vpop.f32.mrf.mxu0
    %v992 = vadd.f32 %v665, %v991
    %993 = vmatmul.bf16.gmra.mxu0 %v837
    %v994 = vpop.f32.mrf.mxu0
    %v995 = vadd.f32 %v666, %v994
    %v996 = vpop.f32.mrf.mxu0
    %v997 = vadd.f32 %v667, %v996
    %998 = vmatmul.bf16.gmra.mxu0 %v838
    %v999 = vpop.f32.mrf.mxu0
    %v1000 = vadd.f32 %v668, %v999
    %v1001 = vpop.f32.mrf.mxu0
    %v1002 = vadd.f32 %v669, %v1001
    %1003 = vmatmul.bf16.gmra.mxu0 %v839
    %v1004 = vpop.f32.mrf.mxu0
    %v1005 = vadd.f32 %v670, %v1004
    %v1006 = vpop.f32.mrf.mxu0
    %v1007 = vadd.f32 %v671, %v1006
    %1008 = vmatmul.bf16.gmra.mxu0 %v840
    %v1009 = vpop.f32.mrf.mxu0
    %v1010 = vadd.f32 %v672, %v1009
    %v1011 = vpop.f32.mrf.mxu0
    %v1012 = vadd.f32 %v673, %v1011
    %1013 = vmatmul.bf16.gmra.mxu0 %v841
    %v1014 = vpop.f32.mrf.mxu0
    %v1015 = vadd.f32 %v674, %v1014
    %v1016 = vpop.f32.mrf.mxu0
    %v1017 = vadd.f32 %v675, %v1016
    %1018 = vmatmul.bf16.gmra.mxu0 %v842
    %v1019 = vpop.f32.mrf.mxu0
    %v1020 = vadd.f32 %v676, %v1019
    %v1021 = vpop.f32.mrf.mxu0
    %v1022 = vadd.f32 %v677, %v1021
    %1023 = vmatmul.bf16.gmra.mxu0 %v843
    %v1024 = vpop.f32.mrf.mxu0
    %v1025 = vadd.f32 %v678, %v1024
    %v1026 = vpop.f32.mrf.mxu0
    %v1027 = vadd.f32 %v679, %v1026
    %1028 = vmatmul.bf16.gmra.mxu0 %v844
    %v1029 = vpop.f32.mrf.mxu0
    %v1030 = vadd.f32 %v680, %v1029
    %v1031 = vpop.f32.mrf.mxu0
    %v1032 = vadd.f32 %v681, %v1031
    %1033 = vmatmul.bf16.gmra.mxu0 %v845
    %v1034 = vpop.f32.mrf.mxu0
    %v1035 = vadd.f32 %v682, %v1034
    %v1036 = vpop.f32.mrf.mxu0
    %v1037 = vadd.f32 %v683, %v1036
    %1038 = vmatmul.bf16.gmra.mxu0 %v846
    %v1039 = vpop.f32.mrf.mxu0
    %v1040 = vadd.f32 %v684, %v1039
    %v1041 = vpop.f32.mrf.mxu0
    %v1042 = vadd.f32 %v685, %v1041
    %1043 = vmatmul.bf16.gmra.mxu0 %v847
    %v1044 = vpop.f32.mrf.mxu0
    %v1045 = vadd.f32 %v686, %v1044
    %v1046 = vpop.f32.mrf.mxu0
    %v1047 = vadd.f32 %v687, %v1046
    %1048 = vdwg.mxu0
    %v1049 = vxor.u32 %v890, 2147483648
    %v1050 = vxor.u32 %v892, 2147483648
    %v1051 = vxor.u32 %v895, 2147483648
    %v1052 = vxor.u32 %v897, 2147483648
    %v1053 = vxor.u32 %v900, 2147483648
    %v1054 = vxor.u32 %v902, 2147483648
    %v1055 = vxor.u32 %v905, 2147483648
    %v1056 = vxor.u32 %v907, 2147483648
    %v1057 = vxor.u32 %v910, 2147483648
    %v1058 = vxor.u32 %v912, 2147483648
    %v1059 = vxor.u32 %v915, 2147483648
    %v1060 = vxor.u32 %v917, 2147483648
    %v1061 = vxor.u32 %v920, 2147483648
    %v1062 = vxor.u32 %v922, 2147483648
    %v1063 = vxor.u32 %v925, 2147483648
    %v1064 = vxor.u32 %v927, 2147483648
    %v1065 = vxor.u32 %v930, 2147483648
    %v1066 = vxor.u32 %v932, 2147483648
    %v1067 = vxor.u32 %v935, 2147483648
    %v1068 = vxor.u32 %v937, 2147483648
    %v1069 = vxor.u32 %v940, 2147483648
    %v1070 = vxor.u32 %v942, 2147483648
    %v1071 = vxor.u32 %v945, 2147483648
    %v1072 = vxor.u32 %v947, 2147483648
    %v1073 = vxor.u32 %v950, 2147483648
    %v1074 = vxor.u32 %v952, 2147483648
    %v1075 = vxor.u32 %v955, 2147483648
    %v1076 = vxor.u32 %v957, 2147483648
    %v1077 = vxor.u32 %v960, 2147483648
    %v1078 = vxor.u32 %v962, 2147483648
    %v1079 = vxor.u32 %v965, 2147483648
    %v1080 = vxor.u32 %v967, 2147483648
    %v1081 = vxor.u32 %v970, 2147483648
    %v1082 = vxor.u32 %v972, 2147483648
    %v1083 = vxor.u32 %v975, 2147483648
    %v1084 = vxor.u32 %v977, 2147483648
    %v1085 = vxor.u32 %v980, 2147483648
    %v1086 = vxor.u32 %v982, 2147483648
    %v1087 = vxor.u32 %v985, 2147483648
    %v1088 = vxor.u32 %v987, 2147483648
    %v1089 = vxor.u32 %v990, 2147483648
    %v1090 = vxor.u32 %v992, 2147483648
    %v1091 = vxor.u32 %v995, 2147483648
    %v1092 = vxor.u32 %v997, 2147483648
    %v1093 = vxor.u32 %v1000, 2147483648
    %v1094 = vxor.u32 %v1002, 2147483648
    %v1095 = vxor.u32 %v1005, 2147483648
    %v1096 = vxor.u32 %v1007, 2147483648
    %v1097 = vxor.u32 %v1010, 2147483648
    %v1098 = vxor.u32 %v1012, 2147483648
    %v1099 = vxor.u32 %v1015, 2147483648
    %v1100 = vxor.u32 %v1017, 2147483648
    %v1101 = vxor.u32 %v1020, 2147483648
    %v1102 = vxor.u32 %v1022, 2147483648
    %v1103 = vxor.u32 %v1025, 2147483648
    %v1104 = vxor.u32 %v1027, 2147483648
    %v1105 = vxor.u32 %v1030, 2147483648
    %v1106 = vxor.u32 %v1032, 2147483648
    %v1107 = vxor.u32 %v1035, 2147483648
    %v1108 = vxor.u32 %v1037, 2147483648
    %v1109 = vxor.u32 %v1040, 2147483648
    %v1110 = vxor.u32 %v1042, 2147483648
    %v1111 = vxor.u32 %v1045, 2147483648
    %v1112 = vxor.u32 %v1047, 2147483648
    %v1113 = vmul.f32 %v1049, 1.442695
    %v1114 = vpow.pop %v1113
    %v1115 = vmul.f32 %v1050, 1.442695
    %v1116 = vpow.pop %v1115
    %v1117 = vmul.f32 %v1051, 1.442695
    %v1118 = vpow.pop %v1117
    %v1119 = vmul.f32 %v1052, 1.442695
    %v1120 = vpow.pop %v1119
    %v1121 = vmul.f32 %v1053, 1.442695
    %v1122 = vpow.pop %v1121
    %v1123 = vmul.f32 %v1054, 1.442695
    %v1124 = vpow.pop %v1123
    %v1125 = vmul.f32 %v1055, 1.442695
    %v1126 = vpow.pop %v1125
    %v1127 = vmul.f32 %v1056, 1.442695
    %v1128 = vpow.pop %v1127
    %v1129 = vmul.f32 %v1057, 1.442695
    %v1130 = vpow.pop %v1129
    %v1131 = vmul.f32 %v1058, 1.442695
    %v1132 = vpow.pop %v1131
    %v1133 = vmul.f32 %v1059, 1.442695
    %v1134 = vpow.pop %v1133
    %v1135 = vmul.f32 %v1060, 1.442695
    %v1136 = vpow.pop %v1135
    %v1137 = vmul.f32 %v1061, 1.442695
    %v1138 = vpow.pop %v1137
    %v1139 = vmul.f32 %v1062, 1.442695
    %v1140 = vpow.pop %v1139
    %v1141 = vmul.f32 %v1063, 1.442695
    %v1142 = vpow.pop %v1141
    %v1143 = vmul.f32 %v1064, 1.442695
    %v1144 = vpow.pop %v1143
    %v1145 = vmul.f32 %v1065, 1.442695
    %v1146 = vpow.pop %v1145
    %v1147 = vmul.f32 %v1066, 1.442695
    %v1148 = vpow.pop %v1147
    %v1149 = vmul.f32 %v1067, 1.442695
    %v1150 = vpow.pop %v1149
    %v1151 = vmul.f32 %v1068, 1.442695
    %v1152 = vpow.pop %v1151
    %v1153 = vmul.f32 %v1069, 1.442695
    %v1154 = vpow.pop %v1153
    %v1155 = vmul.f32 %v1070, 1.442695
    %v1156 = vpow.pop %v1155
    %v1157 = vmul.f32 %v1071, 1.442695
    %v1158 = vpow.pop %v1157
    %v1159 = vmul.f32 %v1072, 1.442695
    %v1160 = vpow.pop %v1159
    %v1161 = vmul.f32 %v1073, 1.442695
    %v1162 = vpow.pop %v1161
    %v1163 = vmul.f32 %v1074, 1.442695
    %v1164 = vpow.pop %v1163
    %v1165 = vmul.f32 %v1075, 1.442695
    %v1166 = vpow.pop %v1165
    %v1167 = vmul.f32 %v1076, 1.442695
    %v1168 = vpow.pop %v1167
    %v1169 = vmul.f32 %v1077, 1.442695
    %v1170 = vpow.pop %v1169
    %v1171 = vmul.f32 %v1078, 1.442695
    %v1172 = vpow.pop %v1171
    %v1173 = vmul.f32 %v1079, 1.442695
    %v1174 = vpow.pop %v1173
    %v1175 = vmul.f32 %v1080, 1.442695
    %v1176 = vpow.pop %v1175
    %v1177 = vmul.f32 %v1081, 1.442695
    %v1178 = vpow.pop %v1177
    %v1179 = vmul.f32 %v1082, 1.442695
    %v1180 = vpow.pop %v1179
    %v1181 = vmul.f32 %v1083, 1.442695
    %v1182 = vpow.pop %v1181
    %v1183 = vmul.f32 %v1084, 1.442695
    %v1184 = vpow.pop %v1183
    %v1185 = vmul.f32 %v1085, 1.442695
    %v1186 = vpow.pop %v1185
    %v1187 = vmul.f32 %v1086, 1.442695
    %v1188 = vpow.pop %v1187
    %v1189 = vmul.f32 %v1087, 1.442695
    %v1190 = vpow.pop %v1189
    %v1191 = vmul.f32 %v1088, 1.442695
    %v1192 = vpow.pop %v1191
    %v1193 = vmul.f32 %v1089, 1.442695
    %v1194 = vpow.pop %v1193
    %v1195 = vmul.f32 %v1090, 1.442695
    %v1196 = vpow.pop %v1195
    %v1197 = vmul.f32 %v1091, 1.442695
    %v1198 = vpow.pop %v1197
    %v1199 = vmul.f32 %v1092, 1.442695
    %v1200 = vpow.pop %v1199
    %v1201 = vmul.f32 %v1093, 1.442695
    %v1202 = vpow.pop %v1201
    %v1203 = vmul.f32 %v1094, 1.442695
    %v1204 = vpow.pop %v1203
    %v1205 = vmul.f32 %v1095, 1.442695
    %v1206 = vpow.pop %v1205
    %v1207 = vmul.f32 %v1096, 1.442695
    %v1208 = vpow.pop %v1207
    %v1209 = vmul.f32 %v1097, 1.442695
    %v1210 = vpow.pop %v1209
    %v1211 = vmul.f32 %v1098, 1.442695
    %v1212 = vpow.pop %v1211
    %v1213 = vmul.f32 %v1099, 1.442695
    %v1214 = vpow.pop %v1213
    %v1215 = vmul.f32 %v1100, 1.442695
    %v1216 = vpow.pop %v1215
    %v1217 = vmul.f32 %v1101, 1.442695
    %v1218 = vpow.pop %v1217
    %v1219 = vmul.f32 %v1102, 1.442695
    %v1220 = vpow.pop %v1219
    %v1221 = vmul.f32 %v1103, 1.442695
    %v1222 = vpow.pop %v1221
    %v1223 = vmul.f32 %v1104, 1.442695
    %v1224 = vpow.pop %v1223
    %v1225 = vmul.f32 %v1105, 1.442695
    %v1226 = vpow.pop %v1225
    %v1227 = vmul.f32 %v1106, 1.442695
    %v1228 = vpow.pop %v1227
    %v1229 = vmul.f32 %v1107, 1.442695
    %v1230 = vpow.pop %v1229
    %v1231 = vmul.f32 %v1108, 1.442695
    %v1232 = vpow.pop %v1231
    %v1233 = vmul.f32 %v1109, 1.442695
    %v1234 = vpow.pop %v1233
    %v1235 = vmul.f32 %v1110, 1.442695
    %v1236 = vpow.pop %v1235
    %v1237 = vmul.f32 %v1111, 1.442695
    %v1238 = vpow.pop %v1237
    %v1239 = vmul.f32 %v1112, 1.442695
    %v1240 = vpow.pop %v1239
    %v1241 = vadd.f32 %v1114, 1.0
    %v1242 = vadd.f32 %v1116, 1.0
    %v1243 = vadd.f32 %v1118, 1.0
    %v1244 = vadd.f32 %v1120, 1.0
    %v1245 = vadd.f32 %v1122, 1.0
    %v1246 = vadd.f32 %v1124, 1.0
    %v1247 = vadd.f32 %v1126, 1.0
    %v1248 = vadd.f32 %v1128, 1.0
    %v1249 = vadd.f32 %v1130, 1.0
    %v1250 = vadd.f32 %v1132, 1.0
    %v1251 = vadd.f32 %v1134, 1.0
    %v1252 = vadd.f32 %v1136, 1.0
    %v1253 = vadd.f32 %v1138, 1.0
    %v1254 = vadd.f32 %v1140, 1.0
    %v1255 = vadd.f32 %v1142, 1.0
    %v1256 = vadd.f32 %v1144, 1.0
    %v1257 = vadd.f32 %v1146, 1.0
    %v1258 = vadd.f32 %v1148, 1.0
    %v1259 = vadd.f32 %v1150, 1.0
    %v1260 = vadd.f32 %v1152, 1.0
    %v1261 = vadd.f32 %v1154, 1.0
    %v1262 = vadd.f32 %v1156, 1.0
    %v1263 = vadd.f32 %v1158, 1.0
    %v1264 = vadd.f32 %v1160, 1.0
    %v1265 = vadd.f32 %v1162, 1.0
    %v1266 = vadd.f32 %v1164, 1.0
    %v1267 = vadd.f32 %v1166, 1.0
    %v1268 = vadd.f32 %v1168, 1.0
    %v1269 = vadd.f32 %v1170, 1.0
    %v1270 = vadd.f32 %v1172, 1.0
    %v1271 = vadd.f32 %v1174, 1.0
    %v1272 = vadd.f32 %v1176, 1.0
    %v1273 = vadd.f32 %v1178, 1.0
    %v1274 = vadd.f32 %v1180, 1.0
    %v1275 = vadd.f32 %v1182, 1.0
    %v1276 = vadd.f32 %v1184, 1.0
    %v1277 = vadd.f32 %v1186, 1.0
    %v1278 = vadd.f32 %v1188, 1.0
    %v1279 = vadd.f32 %v1190, 1.0
    %v1280 = vadd.f32 %v1192, 1.0
    %v1281 = vadd.f32 %v1194, 1.0
    %v1282 = vadd.f32 %v1196, 1.0
    %v1283 = vadd.f32 %v1198, 1.0
    %v1284 = vadd.f32 %v1200, 1.0
    %v1285 = vadd.f32 %v1202, 1.0
    %v1286 = vadd.f32 %v1204, 1.0
    %v1287 = vadd.f32 %v1206, 1.0
    %v1288 = vadd.f32 %v1208, 1.0
    %v1289 = vadd.f32 %v1210, 1.0
    %v1290 = vadd.f32 %v1212, 1.0
    %v1291 = vadd.f32 %v1214, 1.0
    %v1292 = vadd.f32 %v1216, 1.0
    %v1293 = vadd.f32 %v1218, 1.0
    %v1294 = vadd.f32 %v1220, 1.0
    %v1295 = vadd.f32 %v1222, 1.0
    %v1296 = vadd.f32 %v1224, 1.0
    %v1297 = vadd.f32 %v1226, 1.0
    %v1298 = vadd.f32 %v1228, 1.0
    %v1299 = vadd.f32 %v1230, 1.0
    %v1300 = vadd.f32 %v1232, 1.0
    %v1301 = vadd.f32 %v1234, 1.0
    %v1302 = vadd.f32 %v1236, 1.0
    %v1303 = vadd.f32 %v1238, 1.0
    %v1304 = vadd.f32 %v1240, 1.0
    %v1305 = vrcp.pop %v1241
    %v1306 = vmul.f32 %v1241, %v1305
    %v1307 = vsub.f32 1.0, %v1306
    %v1308 = vmul.f32 %v1305, %v1307
    %v1309 = vadd.f32 %v1305, %v1308
    %vm1310 = vweird.f32 %v1241
    %vm1311 = vweird.f32 %v1305
    %vm1312 = vmor %vm1310, %vm1311
    %v1313 = vsel %vm1312, %v1305, %v1309
    %v1314 = vand.u32 2147483647, %v1241
    %vm1315 = vcmp.eq.f32.partialorder %v1314, 8.507059e+37
    %v1316 = vand.u32 %v1241, 2147483648
    %v1317 = vor.u32 1.1754944e-38, %v1316
    %v1318 = vsel %vm1315, %v1317, %v1313
    %v1319 = vmul.f32 1.0, %v1318
    %v1320 = vrcp.pop %v1242
    %v1321 = vmul.f32 %v1242, %v1320
    %v1322 = vsub.f32 1.0, %v1321
    %v1323 = vmul.f32 %v1320, %v1322
    %v1324 = vadd.f32 %v1320, %v1323
    %vm1325 = vweird.f32 %v1242
    %vm1326 = vweird.f32 %v1320
    %vm1327 = vmor %vm1325, %vm1326
    %v1328 = vsel %vm1327, %v1320, %v1324
    %v1329 = vand.u32 2147483647, %v1242
    %vm1330 = vcmp.eq.f32.partialorder %v1329, 8.507059e+37
    %v1331 = vand.u32 %v1242, 2147483648
    %v1332 = vor.u32 1.1754944e-38, %v1331
    %v1333 = vsel %vm1330, %v1332, %v1328
    %v1334 = vmul.f32 1.0, %v1333
    %v1335 = vrcp.pop %v1243
    %v1336 = vmul.f32 %v1243, %v1335
    %v1337 = vsub.f32 1.0, %v1336
    %v1338 = vmul.f32 %v1335, %v1337
    %v1339 = vadd.f32 %v1335, %v1338
    %vm1340 = vweird.f32 %v1243
    %vm1341 = vweird.f32 %v1335
    %vm1342 = vmor %vm1340, %vm1341
    %v1343 = vsel %vm1342, %v1335, %v1339
    %v1344 = vand.u32 2147483647, %v1243
    %vm1345 = vcmp.eq.f32.partialorder %v1344, 8.507059e+37
    %v1346 = vand.u32 %v1243, 2147483648
    %v1347 = vor.u32 1.1754944e-38, %v1346
    %v1348 = vsel %vm1345, %v1347, %v1343
    %v1349 = vmul.f32 1.0, %v1348
    %v1350 = vrcp.pop %v1244
    %v1351 = vmul.f32 %v1244, %v1350
    %v1352 = vsub.f32 1.0, %v1351
    %v1353 = vmul.f32 %v1350, %v1352
    %v1354 = vadd.f32 %v1350, %v1353
    %vm1355 = vweird.f32 %v1244
    %vm1356 = vweird.f32 %v1350
    %vm1357 = vmor %vm1355, %vm1356
    %v1358 = vsel %vm1357, %v1350, %v1354
    %v1359 = vand.u32 2147483647, %v1244
    %vm1360 = vcmp.eq.f32.partialorder %v1359, 8.507059e+37
    %v1361 = vand.u32 %v1244, 2147483648
    %v1362 = vor.u32 1.1754944e-38, %v1361
    %v1363 = vsel %vm1360, %v1362, %v1358
    %v1364 = vmul.f32 1.0, %v1363
    %v1365 = vrcp.pop %v1245
    %v1366 = vmul.f32 %v1245, %v1365
    %v1367 = vsub.f32 1.0, %v1366
    %v1368 = vmul.f32 %v1365, %v1367
    %v1369 = vadd.f32 %v1365, %v1368
    %vm1370 = vweird.f32 %v1245
    %vm1371 = vweird.f32 %v1365
    %vm1372 = vmor %vm1370, %vm1371
    %v1373 = vsel %vm1372, %v1365, %v1369
    %v1374 = vand.u32 2147483647, %v1245
    %vm1375 = vcmp.eq.f32.partialorder %v1374, 8.507059e+37
    %v1376 = vand.u32 %v1245, 2147483648
    %v1377 = vor.u32 1.1754944e-38, %v1376
    %v1378 = vsel %vm1375, %v1377, %v1373
    %v1379 = vmul.f32 1.0, %v1378
    %v1380 = vrcp.pop %v1246
    %v1381 = vmul.f32 %v1246, %v1380
    %v1382 = vsub.f32 1.0, %v1381
    %v1383 = vmul.f32 %v1380, %v1382
    %v1384 = vadd.f32 %v1380, %v1383
    %vm1385 = vweird.f32 %v1246
    %vm1386 = vweird.f32 %v1380
    %vm1387 = vmor %vm1385, %vm1386
    %v1388 = vsel %vm1387, %v1380, %v1384
    %v1389 = vand.u32 2147483647, %v1246
    %vm1390 = vcmp.eq.f32.partialorder %v1389, 8.507059e+37
    %v1391 = vand.u32 %v1246, 2147483648
    %v1392 = vor.u32 1.1754944e-38, %v1391
    %v1393 = vsel %vm1390, %v1392, %v1388
    %v1394 = vmul.f32 1.0, %v1393
    %v1395 = vrcp.pop %v1247
    %v1396 = vmul.f32 %v1247, %v1395
    %v1397 = vsub.f32 1.0, %v1396
    %v1398 = vmul.f32 %v1395, %v1397
    %v1399 = vadd.f32 %v1395, %v1398
    %vm1400 = vweird.f32 %v1247
    %vm1401 = vweird.f32 %v1395
    %vm1402 = vmor %vm1400, %vm1401
    %v1403 = vsel %vm1402, %v1395, %v1399
    %v1404 = vand.u32 2147483647, %v1247
    %vm1405 = vcmp.eq.f32.partialorder %v1404, 8.507059e+37
    %v1406 = vand.u32 %v1247, 2147483648
    %v1407 = vor.u32 1.1754944e-38, %v1406
    %v1408 = vsel %vm1405, %v1407, %v1403
    %v1409 = vmul.f32 1.0, %v1408
    %v1410 = vrcp.pop %v1248
    %v1411 = vmul.f32 %v1248, %v1410
    %v1412 = vsub.f32 1.0, %v1411
    %v1413 = vmul.f32 %v1410, %v1412
    %v1414 = vadd.f32 %v1410, %v1413
    %vm1415 = vweird.f32 %v1248
    %vm1416 = vweird.f32 %v1410
    %vm1417 = vmor %vm1415, %vm1416
    %v1418 = vsel %vm1417, %v1410, %v1414
    %v1419 = vand.u32 2147483647, %v1248
    %vm1420 = vcmp.eq.f32.partialorder %v1419, 8.507059e+37
    %v1421 = vand.u32 %v1248, 2147483648
    %v1422 = vor.u32 1.1754944e-38, %v1421
    %v1423 = vsel %vm1420, %v1422, %v1418
    %v1424 = vmul.f32 1.0, %v1423
    %v1425 = vrcp.pop %v1249
    %v1426 = vmul.f32 %v1249, %v1425
    %v1427 = vsub.f32 1.0, %v1426
    %v1428 = vmul.f32 %v1425, %v1427
    %v1429 = vadd.f32 %v1425, %v1428
    %vm1430 = vweird.f32 %v1249
    %vm1431 = vweird.f32 %v1425
    %vm1432 = vmor %vm1430, %vm1431
    %v1433 = vsel %vm1432, %v1425, %v1429
    %v1434 = vand.u32 2147483647, %v1249
    %vm1435 = vcmp.eq.f32.partialorder %v1434, 8.507059e+37
    %v1436 = vand.u32 %v1249, 2147483648
    %v1437 = vor.u32 1.1754944e-38, %v1436
    %v1438 = vsel %vm1435, %v1437, %v1433
    %v1439 = vmul.f32 1.0, %v1438
    %v1440 = vrcp.pop %v1250
    %v1441 = vmul.f32 %v1250, %v1440
    %v1442 = vsub.f32 1.0, %v1441
    %v1443 = vmul.f32 %v1440, %v1442
    %v1444 = vadd.f32 %v1440, %v1443
    %vm1445 = vweird.f32 %v1250
    %vm1446 = vweird.f32 %v1440
    %vm1447 = vmor %vm1445, %vm1446
    %v1448 = vsel %vm1447, %v1440, %v1444
    %v1449 = vand.u32 2147483647, %v1250
    %vm1450 = vcmp.eq.f32.partialorder %v1449, 8.507059e+37
    %v1451 = vand.u32 %v1250, 2147483648
    %v1452 = vor.u32 1.1754944e-38, %v1451
    %v1453 = vsel %vm1450, %v1452, %v1448
    %v1454 = vmul.f32 1.0, %v1453
    %v1455 = vrcp.pop %v1251
    %v1456 = vmul.f32 %v1251, %v1455
    %v1457 = vsub.f32 1.0, %v1456
    %v1458 = vmul.f32 %v1455, %v1457
    %v1459 = vadd.f32 %v1455, %v1458
    %vm1460 = vweird.f32 %v1251
    %vm1461 = vweird.f32 %v1455
    %vm1462 = vmor %vm1460, %vm1461
    %v1463 = vsel %vm1462, %v1455, %v1459
    %v1464 = vand.u32 2147483647, %v1251
    %vm1465 = vcmp.eq.f32.partialorder %v1464, 8.507059e+37
    %v1466 = vand.u32 %v1251, 2147483648
    %v1467 = vor.u32 1.1754944e-38, %v1466
    %v1468 = vsel %vm1465, %v1467, %v1463
    %v1469 = vmul.f32 1.0, %v1468
    %v1470 = vrcp.pop %v1252
    %v1471 = vmul.f32 %v1252, %v1470
    %v1472 = vsub.f32 1.0, %v1471
    %v1473 = vmul.f32 %v1470, %v1472
    %v1474 = vadd.f32 %v1470, %v1473
    %vm1475 = vweird.f32 %v1252
    %vm1476 = vweird.f32 %v1470
    %vm1477 = vmor %vm1475, %vm1476
    %v1478 = vsel %vm1477, %v1470, %v1474
    %v1479 = vand.u32 2147483647, %v1252
    %vm1480 = vcmp.eq.f32.partialorder %v1479, 8.507059e+37
    %v1481 = vand.u32 %v1252, 2147483648
    %v1482 = vor.u32 1.1754944e-38, %v1481
    %v1483 = vsel %vm1480, %v1482, %v1478
    %v1484 = vmul.f32 1.0, %v1483
    %v1485 = vrcp.pop %v1253
    %v1486 = vmul.f32 %v1253, %v1485
    %v1487 = vsub.f32 1.0, %v1486
    %v1488 = vmul.f32 %v1485, %v1487
    %v1489 = vadd.f32 %v1485, %v1488
    %vm1490 = vweird.f32 %v1253
    %vm1491 = vweird.f32 %v1485
    %vm1492 = vmor %vm1490, %vm1491
    %v1493 = vsel %vm1492, %v1485, %v1489
    %v1494 = vand.u32 2147483647, %v1253
    %vm1495 = vcmp.eq.f32.partialorder %v1494, 8.507059e+37
    %v1496 = vand.u32 %v1253, 2147483648
    %v1497 = vor.u32 1.1754944e-38, %v1496
    %v1498 = vsel %vm1495, %v1497, %v1493
    %v1499 = vmul.f32 1.0, %v1498
    %v1500 = vrcp.pop %v1254
    %v1501 = vmul.f32 %v1254, %v1500
    %v1502 = vsub.f32 1.0, %v1501
    %v1503 = vmul.f32 %v1500, %v1502
    %v1504 = vadd.f32 %v1500, %v1503
    %vm1505 = vweird.f32 %v1254
    %vm1506 = vweird.f32 %v1500
    %vm1507 = vmor %vm1505, %vm1506
    %v1508 = vsel %vm1507, %v1500, %v1504
    %v1509 = vand.u32 2147483647, %v1254
    %vm1510 = vcmp.eq.f32.partialorder %v1509, 8.507059e+37
    %v1511 = vand.u32 %v1254, 2147483648
    %v1512 = vor.u32 1.1754944e-38, %v1511
    %v1513 = vsel %vm1510, %v1512, %v1508
    %v1514 = vmul.f32 1.0, %v1513
    %v1515 = vrcp.pop %v1255
    %v1516 = vmul.f32 %v1255, %v1515
    %v1517 = vsub.f32 1.0, %v1516
    %v1518 = vmul.f32 %v1515, %v1517
    %v1519 = vadd.f32 %v1515, %v1518
    %vm1520 = vweird.f32 %v1255
    %vm1521 = vweird.f32 %v1515
    %vm1522 = vmor %vm1520, %vm1521
    %v1523 = vsel %vm1522, %v1515, %v1519
    %v1524 = vand.u32 2147483647, %v1255
    %vm1525 = vcmp.eq.f32.partialorder %v1524, 8.507059e+37
    %v1526 = vand.u32 %v1255, 2147483648
    %v1527 = vor.u32 1.1754944e-38, %v1526
    %v1528 = vsel %vm1525, %v1527, %v1523
    %v1529 = vmul.f32 1.0, %v1528
    %v1530 = vrcp.pop %v1256
    %v1531 = vmul.f32 %v1256, %v1530
    %v1532 = vsub.f32 1.0, %v1531
    %v1533 = vmul.f32 %v1530, %v1532
    %v1534 = vadd.f32 %v1530, %v1533
    %vm1535 = vweird.f32 %v1256
    %vm1536 = vweird.f32 %v1530
    %vm1537 = vmor %vm1535, %vm1536
    %v1538 = vsel %vm1537, %v1530, %v1534
    %v1539 = vand.u32 2147483647, %v1256
    %vm1540 = vcmp.eq.f32.partialorder %v1539, 8.507059e+37
    %v1541 = vand.u32 %v1256, 2147483648
    %v1542 = vor.u32 1.1754944e-38, %v1541
    %v1543 = vsel %vm1540, %v1542, %v1538
    %v1544 = vmul.f32 1.0, %v1543
    %v1545 = vrcp.pop %v1257
    %v1546 = vmul.f32 %v1257, %v1545
    %v1547 = vsub.f32 1.0, %v1546
    %v1548 = vmul.f32 %v1545, %v1547
    %v1549 = vadd.f32 %v1545, %v1548
    %vm1550 = vweird.f32 %v1257
    %vm1551 = vweird.f32 %v1545
    %vm1552 = vmor %vm1550, %vm1551
    %v1553 = vsel %vm1552, %v1545, %v1549
    %v1554 = vand.u32 2147483647, %v1257
    %vm1555 = vcmp.eq.f32.partialorder %v1554, 8.507059e+37
    %v1556 = vand.u32 %v1257, 2147483648
    %v1557 = vor.u32 1.1754944e-38, %v1556
    %v1558 = vsel %vm1555, %v1557, %v1553
    %v1559 = vmul.f32 1.0, %v1558
    %v1560 = vrcp.pop %v1258
    %v1561 = vmul.f32 %v1258, %v1560
    %v1562 = vsub.f32 1.0, %v1561
    %v1563 = vmul.f32 %v1560, %v1562
    %v1564 = vadd.f32 %v1560, %v1563
    %vm1565 = vweird.f32 %v1258
    %vm1566 = vweird.f32 %v1560
    %vm1567 = vmor %vm1565, %vm1566
    %v1568 = vsel %vm1567, %v1560, %v1564
    %v1569 = vand.u32 2147483647, %v1258
    %vm1570 = vcmp.eq.f32.partialorder %v1569, 8.507059e+37
    %v1571 = vand.u32 %v1258, 2147483648
    %v1572 = vor.u32 1.1754944e-38, %v1571
    %v1573 = vsel %vm1570, %v1572, %v1568
    %v1574 = vmul.f32 1.0, %v1573
    %v1575 = vrcp.pop %v1259
    %v1576 = vmul.f32 %v1259, %v1575
    %v1577 = vsub.f32 1.0, %v1576
    %v1578 = vmul.f32 %v1575, %v1577
    %v1579 = vadd.f32 %v1575, %v1578
    %vm1580 = vweird.f32 %v1259
    %vm1581 = vweird.f32 %v1575
    %vm1582 = vmor %vm1580, %vm1581
    %v1583 = vsel %vm1582, %v1575, %v1579
    %v1584 = vand.u32 2147483647, %v1259
    %vm1585 = vcmp.eq.f32.partialorder %v1584, 8.507059e+37
    %v1586 = vand.u32 %v1259, 2147483648
    %v1587 = vor.u32 1.1754944e-38, %v1586
    %v1588 = vsel %vm1585, %v1587, %v1583
    %v1589 = vmul.f32 1.0, %v1588
    %v1590 = vrcp.pop %v1260
    %v1591 = vmul.f32 %v1260, %v1590
    %v1592 = vsub.f32 1.0, %v1591
    %v1593 = vmul.f32 %v1590, %v1592
    %v1594 = vadd.f32 %v1590, %v1593
    %vm1595 = vweird.f32 %v1260
    %vm1596 = vweird.f32 %v1590
    %vm1597 = vmor %vm1595, %vm1596
    %v1598 = vsel %vm1597, %v1590, %v1594
    %v1599 = vand.u32 2147483647, %v1260
    %vm1600 = vcmp.eq.f32.partialorder %v1599, 8.507059e+37
    %v1601 = vand.u32 %v1260, 2147483648
    %v1602 = vor.u32 1.1754944e-38, %v1601
    %v1603 = vsel %vm1600, %v1602, %v1598
    %v1604 = vmul.f32 1.0, %v1603
    %v1605 = vrcp.pop %v1261
    %v1606 = vmul.f32 %v1261, %v1605
    %v1607 = vsub.f32 1.0, %v1606
    %v1608 = vmul.f32 %v1605, %v1607
    %v1609 = vadd.f32 %v1605, %v1608
    %vm1610 = vweird.f32 %v1261
    %vm1611 = vweird.f32 %v1605
    %vm1612 = vmor %vm1610, %vm1611
    %v1613 = vsel %vm1612, %v1605, %v1609
    %v1614 = vand.u32 2147483647, %v1261
    %vm1615 = vcmp.eq.f32.partialorder %v1614, 8.507059e+37
    %v1616 = vand.u32 %v1261, 2147483648
    %v1617 = vor.u32 1.1754944e-38, %v1616
    %v1618 = vsel %vm1615, %v1617, %v1613
    %v1619 = vmul.f32 1.0, %v1618
    %v1620 = vrcp.pop %v1262
    %v1621 = vmul.f32 %v1262, %v1620
    %v1622 = vsub.f32 1.0, %v1621
    %v1623 = vmul.f32 %v1620, %v1622
    %v1624 = vadd.f32 %v1620, %v1623
    %vm1625 = vweird.f32 %v1262
    %vm1626 = vweird.f32 %v1620
    %vm1627 = vmor %vm1625, %vm1626
    %v1628 = vsel %vm1627, %v1620, %v1624
    %v1629 = vand.u32 2147483647, %v1262
    %vm1630 = vcmp.eq.f32.partialorder %v1629, 8.507059e+37
    %v1631 = vand.u32 %v1262, 2147483648
    %v1632 = vor.u32 1.1754944e-38, %v1631
    %v1633 = vsel %vm1630, %v1632, %v1628
    %v1634 = vmul.f32 1.0, %v1633
    %v1635 = vrcp.pop %v1263
    %v1636 = vmul.f32 %v1263, %v1635
    %v1637 = vsub.f32 1.0, %v1636
    %v1638 = vmul.f32 %v1635, %v1637
    %v1639 = vadd.f32 %v1635, %v1638
    %vm1640 = vweird.f32 %v1263
    %vm1641 = vweird.f32 %v1635
    %vm1642 = vmor %vm1640, %vm1641
    %v1643 = vsel %vm1642, %v1635, %v1639
    %v1644 = vand.u32 2147483647, %v1263
    %vm1645 = vcmp.eq.f32.partialorder %v1644, 8.507059e+37
    %v1646 = vand.u32 %v1263, 2147483648
    %v1647 = vor.u32 1.1754944e-38, %v1646
    %v1648 = vsel %vm1645, %v1647, %v1643
    %v1649 = vmul.f32 1.0, %v1648
    %v1650 = vrcp.pop %v1264
    %v1651 = vmul.f32 %v1264, %v1650
    %v1652 = vsub.f32 1.0, %v1651
    %v1653 = vmul.f32 %v1650, %v1652
    %v1654 = vadd.f32 %v1650, %v1653
    %vm1655 = vweird.f32 %v1264
    %vm1656 = vweird.f32 %v1650
    %vm1657 = vmor %vm1655, %vm1656
    %v1658 = vsel %vm1657, %v1650, %v1654
    %v1659 = vand.u32 2147483647, %v1264
    %vm1660 = vcmp.eq.f32.partialorder %v1659, 8.507059e+37
    %v1661 = vand.u32 %v1264, 2147483648
    %v1662 = vor.u32 1.1754944e-38, %v1661
    %v1663 = vsel %vm1660, %v1662, %v1658
    %v1664 = vmul.f32 1.0, %v1663
    %v1665 = vrcp.pop %v1265
    %v1666 = vmul.f32 %v1265, %v1665
    %v1667 = vsub.f32 1.0, %v1666
    %v1668 = vmul.f32 %v1665, %v1667
    %v1669 = vadd.f32 %v1665, %v1668
    %vm1670 = vweird.f32 %v1265
    %vm1671 = vweird.f32 %v1665
    %vm1672 = vmor %vm1670, %vm1671
    %v1673 = vsel %vm1672, %v1665, %v1669
    %v1674 = vand.u32 2147483647, %v1265
    %vm1675 = vcmp.eq.f32.partialorder %v1674, 8.507059e+37
    %v1676 = vand.u32 %v1265, 2147483648
    %v1677 = vor.u32 1.1754944e-38, %v1676
    %v1678 = vsel %vm1675, %v1677, %v1673
    %v1679 = vmul.f32 1.0, %v1678
    %v1680 = vrcp.pop %v1266
    %v1681 = vmul.f32 %v1266, %v1680
    %v1682 = vsub.f32 1.0, %v1681
    %v1683 = vmul.f32 %v1680, %v1682
    %v1684 = vadd.f32 %v1680, %v1683
    %vm1685 = vweird.f32 %v1266
    %vm1686 = vweird.f32 %v1680
    %vm1687 = vmor %vm1685, %vm1686
    %v1688 = vsel %vm1687, %v1680, %v1684
    %v1689 = vand.u32 2147483647, %v1266
    %vm1690 = vcmp.eq.f32.partialorder %v1689, 8.507059e+37
    %v1691 = vand.u32 %v1266, 2147483648
    %v1692 = vor.u32 1.1754944e-38, %v1691
    %v1693 = vsel %vm1690, %v1692, %v1688
    %v1694 = vmul.f32 1.0, %v1693
    %v1695 = vrcp.pop %v1267
    %v1696 = vmul.f32 %v1267, %v1695
    %v1697 = vsub.f32 1.0, %v1696
    %v1698 = vmul.f32 %v1695, %v1697
    %v1699 = vadd.f32 %v1695, %v1698
    %vm1700 = vweird.f32 %v1267
    %vm1701 = vweird.f32 %v1695
    %vm1702 = vmor %vm1700, %vm1701
    %v1703 = vsel %vm1702, %v1695, %v1699
    %v1704 = vand.u32 2147483647, %v1267
    %vm1705 = vcmp.eq.f32.partialorder %v1704, 8.507059e+37
    %v1706 = vand.u32 %v1267, 2147483648
    %v1707 = vor.u32 1.1754944e-38, %v1706
    %v1708 = vsel %vm1705, %v1707, %v1703
    %v1709 = vmul.f32 1.0, %v1708
    %v1710 = vrcp.pop %v1268
    %v1711 = vmul.f32 %v1268, %v1710
    %v1712 = vsub.f32 1.0, %v1711
    %v1713 = vmul.f32 %v1710, %v1712
    %v1714 = vadd.f32 %v1710, %v1713
    %vm1715 = vweird.f32 %v1268
    %vm1716 = vweird.f32 %v1710
    %vm1717 = vmor %vm1715, %vm1716
    %v1718 = vsel %vm1717, %v1710, %v1714
    %v1719 = vand.u32 2147483647, %v1268
    %vm1720 = vcmp.eq.f32.partialorder %v1719, 8.507059e+37
    %v1721 = vand.u32 %v1268, 2147483648
    %v1722 = vor.u32 1.1754944e-38, %v1721
    %v1723 = vsel %vm1720, %v1722, %v1718
    %v1724 = vmul.f32 1.0, %v1723
    %v1725 = vrcp.pop %v1269
    %v1726 = vmul.f32 %v1269, %v1725
    %v1727 = vsub.f32 1.0, %v1726
    %v1728 = vmul.f32 %v1725, %v1727
    %v1729 = vadd.f32 %v1725, %v1728
    %vm1730 = vweird.f32 %v1269
    %vm1731 = vweird.f32 %v1725
    %vm1732 = vmor %vm1730, %vm1731
    %v1733 = vsel %vm1732, %v1725, %v1729
    %v1734 = vand.u32 2147483647, %v1269
    %vm1735 = vcmp.eq.f32.partialorder %v1734, 8.507059e+37
    %v1736 = vand.u32 %v1269, 2147483648
    %v1737 = vor.u32 1.1754944e-38, %v1736
    %v1738 = vsel %vm1735, %v1737, %v1733
    %v1739 = vmul.f32 1.0, %v1738
    %v1740 = vrcp.pop %v1270
    %v1741 = vmul.f32 %v1270, %v1740
    %v1742 = vsub.f32 1.0, %v1741
    %v1743 = vmul.f32 %v1740, %v1742
    %v1744 = vadd.f32 %v1740, %v1743
    %vm1745 = vweird.f32 %v1270
    %vm1746 = vweird.f32 %v1740
    %vm1747 = vmor %vm1745, %vm1746
    %v1748 = vsel %vm1747, %v1740, %v1744
    %v1749 = vand.u32 2147483647, %v1270
    %vm1750 = vcmp.eq.f32.partialorder %v1749, 8.507059e+37
    %v1751 = vand.u32 %v1270, 2147483648
    %v1752 = vor.u32 1.1754944e-38, %v1751
    %v1753 = vsel %vm1750, %v1752, %v1748
    %v1754 = vmul.f32 1.0, %v1753
    %v1755 = vrcp.pop %v1271
    %v1756 = vmul.f32 %v1271, %v1755
    %v1757 = vsub.f32 1.0, %v1756
    %v1758 = vmul.f32 %v1755, %v1757
    %v1759 = vadd.f32 %v1755, %v1758
    %vm1760 = vweird.f32 %v1271
    %vm1761 = vweird.f32 %v1755
    %vm1762 = vmor %vm1760, %vm1761
    %v1763 = vsel %vm1762, %v1755, %v1759
    %v1764 = vand.u32 2147483647, %v1271
    %vm1765 = vcmp.eq.f32.partialorder %v1764, 8.507059e+37
    %v1766 = vand.u32 %v1271, 2147483648
    %v1767 = vor.u32 1.1754944e-38, %v1766
    %v1768 = vsel %vm1765, %v1767, %v1763
    %v1769 = vmul.f32 1.0, %v1768
    %v1770 = vrcp.pop %v1272
    %v1771 = vmul.f32 %v1272, %v1770
    %v1772 = vsub.f32 1.0, %v1771
    %v1773 = vmul.f32 %v1770, %v1772
    %v1774 = vadd.f32 %v1770, %v1773
    %vm1775 = vweird.f32 %v1272
    %vm1776 = vweird.f32 %v1770
    %vm1777 = vmor %vm1775, %vm1776
    %v1778 = vsel %vm1777, %v1770, %v1774
    %v1779 = vand.u32 2147483647, %v1272
    %vm1780 = vcmp.eq.f32.partialorder %v1779, 8.507059e+37
    %v1781 = vand.u32 %v1272, 2147483648
    %v1782 = vor.u32 1.1754944e-38, %v1781
    %v1783 = vsel %vm1780, %v1782, %v1778
    %v1784 = vmul.f32 1.0, %v1783
    %v1785 = vrcp.pop %v1273
    %v1786 = vmul.f32 %v1273, %v1785
    %v1787 = vsub.f32 1.0, %v1786
    %v1788 = vmul.f32 %v1785, %v1787
    %v1789 = vadd.f32 %v1785, %v1788
    %vm1790 = vweird.f32 %v1273
    %vm1791 = vweird.f32 %v1785
    %vm1792 = vmor %vm1790, %vm1791
    %v1793 = vsel %vm1792, %v1785, %v1789
    %v1794 = vand.u32 2147483647, %v1273
    %vm1795 = vcmp.eq.f32.partialorder %v1794, 8.507059e+37
    %v1796 = vand.u32 %v1273, 2147483648
    %v1797 = vor.u32 1.1754944e-38, %v1796
    %v1798 = vsel %vm1795, %v1797, %v1793
    %v1799 = vmul.f32 1.0, %v1798
    %v1800 = vrcp.pop %v1274
    %v1801 = vmul.f32 %v1274, %v1800
    %v1802 = vsub.f32 1.0, %v1801
    %v1803 = vmul.f32 %v1800, %v1802
    %v1804 = vadd.f32 %v1800, %v1803
    %vm1805 = vweird.f32 %v1274
    %vm1806 = vweird.f32 %v1800
    %vm1807 = vmor %vm1805, %vm1806
    %v1808 = vsel %vm1807, %v1800, %v1804
    %v1809 = vand.u32 2147483647, %v1274
    %vm1810 = vcmp.eq.f32.partialorder %v1809, 8.507059e+37
    %v1811 = vand.u32 %v1274, 2147483648
    %v1812 = vor.u32 1.1754944e-38, %v1811
    %v1813 = vsel %vm1810, %v1812, %v1808
    %v1814 = vmul.f32 1.0, %v1813
    %v1815 = vrcp.pop %v1275
    %v1816 = vmul.f32 %v1275, %v1815
    %v1817 = vsub.f32 1.0, %v1816
    %v1818 = vmul.f32 %v1815, %v1817
    %v1819 = vadd.f32 %v1815, %v1818
    %vm1820 = vweird.f32 %v1275
    %vm1821 = vweird.f32 %v1815
    %vm1822 = vmor %vm1820, %vm1821
    %v1823 = vsel %vm1822, %v1815, %v1819
    %v1824 = vand.u32 2147483647, %v1275
    %vm1825 = vcmp.eq.f32.partialorder %v1824, 8.507059e+37
    %v1826 = vand.u32 %v1275, 2147483648
    %v1827 = vor.u32 1.1754944e-38, %v1826
    %v1828 = vsel %vm1825, %v1827, %v1823
    %v1829 = vmul.f32 1.0, %v1828
    %v1830 = vrcp.pop %v1276
    %v1831 = vmul.f32 %v1276, %v1830
    %v1832 = vsub.f32 1.0, %v1831
    %v1833 = vmul.f32 %v1830, %v1832
    %v1834 = vadd.f32 %v1830, %v1833
    %vm1835 = vweird.f32 %v1276
    %vm1836 = vweird.f32 %v1830
    %vm1837 = vmor %vm1835, %vm1836
    %v1838 = vsel %vm1837, %v1830, %v1834
    %v1839 = vand.u32 2147483647, %v1276
    %vm1840 = vcmp.eq.f32.partialorder %v1839, 8.507059e+37
    %v1841 = vand.u32 %v1276, 2147483648
    %v1842 = vor.u32 1.1754944e-38, %v1841
    %v1843 = vsel %vm1840, %v1842, %v1838
    %v1844 = vmul.f32 1.0, %v1843
    %v1845 = vrcp.pop %v1277
    %v1846 = vmul.f32 %v1277, %v1845
    %v1847 = vsub.f32 1.0, %v1846
    %v1848 = vmul.f32 %v1845, %v1847
    %v1849 = vadd.f32 %v1845, %v1848
    %vm1850 = vweird.f32 %v1277
    %vm1851 = vweird.f32 %v1845
    %vm1852 = vmor %vm1850, %vm1851
    %v1853 = vsel %vm1852, %v1845, %v1849
    %v1854 = vand.u32 2147483647, %v1277
    %vm1855 = vcmp.eq.f32.partialorder %v1854, 8.507059e+37
    %v1856 = vand.u32 %v1277, 2147483648
    %v1857 = vor.u32 1.1754944e-38, %v1856
    %v1858 = vsel %vm1855, %v1857, %v1853
    %v1859 = vmul.f32 1.0, %v1858
    %v1860 = vrcp.pop %v1278
    %v1861 = vmul.f32 %v1278, %v1860
    %v1862 = vsub.f32 1.0, %v1861
    %v1863 = vmul.f32 %v1860, %v1862
    %v1864 = vadd.f32 %v1860, %v1863
    %vm1865 = vweird.f32 %v1278
    %vm1866 = vweird.f32 %v1860
    %vm1867 = vmor %vm1865, %vm1866
    %v1868 = vsel %vm1867, %v1860, %v1864
    %v1869 = vand.u32 2147483647, %v1278
    %vm1870 = vcmp.eq.f32.partialorder %v1869, 8.507059e+37
    %v1871 = vand.u32 %v1278, 2147483648
    %v1872 = vor.u32 1.1754944e-38, %v1871
    %v1873 = vsel %vm1870, %v1872, %v1868
    %v1874 = vmul.f32 1.0, %v1873
    %v1875 = vrcp.pop %v1279
    %v1876 = vmul.f32 %v1279, %v1875
    %v1877 = vsub.f32 1.0, %v1876
    %v1878 = vmul.f32 %v1875, %v1877
    %v1879 = vadd.f32 %v1875, %v1878
    %vm1880 = vweird.f32 %v1279
    %vm1881 = vweird.f32 %v1875
    %vm1882 = vmor %vm1880, %vm1881
    %v1883 = vsel %vm1882, %v1875, %v1879
    %v1884 = vand.u32 2147483647, %v1279
    %vm1885 = vcmp.eq.f32.partialorder %v1884, 8.507059e+37
    %v1886 = vand.u32 %v1279, 2147483648
    %v1887 = vor.u32 1.1754944e-38, %v1886
    %v1888 = vsel %vm1885, %v1887, %v1883
    %v1889 = vmul.f32 1.0, %v1888
    %v1890 = vrcp.pop %v1280
    %v1891 = vmul.f32 %v1280, %v1890
    %v1892 = vsub.f32 1.0, %v1891
    %v1893 = vmul.f32 %v1890, %v1892
    %v1894 = vadd.f32 %v1890, %v1893
    %vm1895 = vweird.f32 %v1280
    %vm1896 = vweird.f32 %v1890
    %vm1897 = vmor %vm1895, %vm1896
    %v1898 = vsel %vm1897, %v1890, %v1894
    %v1899 = vand.u32 2147483647, %v1280
    %vm1900 = vcmp.eq.f32.partialorder %v1899, 8.507059e+37
    %v1901 = vand.u32 %v1280, 2147483648
    %v1902 = vor.u32 1.1754944e-38, %v1901
    %v1903 = vsel %vm1900, %v1902, %v1898
    %v1904 = vmul.f32 1.0, %v1903
    %v1905 = vrcp.pop %v1281
    %v1906 = vmul.f32 %v1281, %v1905
    %v1907 = vsub.f32 1.0, %v1906
    %v1908 = vmul.f32 %v1905, %v1907
    %v1909 = vadd.f32 %v1905, %v1908
    %vm1910 = vweird.f32 %v1281
    %vm1911 = vweird.f32 %v1905
    %vm1912 = vmor %vm1910, %vm1911
    %v1913 = vsel %vm1912, %v1905, %v1909
    %v1914 = vand.u32 2147483647, %v1281
    %vm1915 = vcmp.eq.f32.partialorder %v1914, 8.507059e+37
    %v1916 = vand.u32 %v1281, 2147483648
    %v1917 = vor.u32 1.1754944e-38, %v1916
    %v1918 = vsel %vm1915, %v1917, %v1913
    %v1919 = vmul.f32 1.0, %v1918
    %v1920 = vrcp.pop %v1282
    %v1921 = vmul.f32 %v1282, %v1920
    %v1922 = vsub.f32 1.0, %v1921
    %v1923 = vmul.f32 %v1920, %v1922
    %v1924 = vadd.f32 %v1920, %v1923
    %vm1925 = vweird.f32 %v1282
    %vm1926 = vweird.f32 %v1920
    %vm1927 = vmor %vm1925, %vm1926
    %v1928 = vsel %vm1927, %v1920, %v1924
    %v1929 = vand.u32 2147483647, %v1282
    %vm1930 = vcmp.eq.f32.partialorder %v1929, 8.507059e+37
    %v1931 = vand.u32 %v1282, 2147483648
    %v1932 = vor.u32 1.1754944e-38, %v1931
    %v1933 = vsel %vm1930, %v1932, %v1928
    %v1934 = vmul.f32 1.0, %v1933
    %v1935 = vrcp.pop %v1283
    %v1936 = vmul.f32 %v1283, %v1935
    %v1937 = vsub.f32 1.0, %v1936
    %v1938 = vmul.f32 %v1935, %v1937
    %v1939 = vadd.f32 %v1935, %v1938
    %vm1940 = vweird.f32 %v1283
    %vm1941 = vweird.f32 %v1935
    %vm1942 = vmor %vm1940, %vm1941
    %v1943 = vsel %vm1942, %v1935, %v1939
    %v1944 = vand.u32 2147483647, %v1283
    %vm1945 = vcmp.eq.f32.partialorder %v1944, 8.507059e+37
    %v1946 = vand.u32 %v1283, 2147483648
    %v1947 = vor.u32 1.1754944e-38, %v1946
    %v1948 = vsel %vm1945, %v1947, %v1943
    %v1949 = vmul.f32 1.0, %v1948
    %v1950 = vrcp.pop %v1284
    %v1951 = vmul.f32 %v1284, %v1950
    %v1952 = vsub.f32 1.0, %v1951
    %v1953 = vmul.f32 %v1950, %v1952
    %v1954 = vadd.f32 %v1950, %v1953
    %vm1955 = vweird.f32 %v1284
    %vm1956 = vweird.f32 %v1950
    %vm1957 = vmor %vm1955, %vm1956
    %v1958 = vsel %vm1957, %v1950, %v1954
    %v1959 = vand.u32 2147483647, %v1284
    %vm1960 = vcmp.eq.f32.partialorder %v1959, 8.507059e+37
    %v1961 = vand.u32 %v1284, 2147483648
    %v1962 = vor.u32 1.1754944e-38, %v1961
    %v1963 = vsel %vm1960, %v1962, %v1958
    %v1964 = vmul.f32 1.0, %v1963
    %v1965 = vrcp.pop %v1285
    %v1966 = vmul.f32 %v1285, %v1965
    %v1967 = vsub.f32 1.0, %v1966
    %v1968 = vmul.f32 %v1965, %v1967
    %v1969 = vadd.f32 %v1965, %v1968
    %vm1970 = vweird.f32 %v1285
    %vm1971 = vweird.f32 %v1965
    %vm1972 = vmor %vm1970, %vm1971
    %v1973 = vsel %vm1972, %v1965, %v1969
    %v1974 = vand.u32 2147483647, %v1285
    %vm1975 = vcmp.eq.f32.partialorder %v1974, 8.507059e+37
    %v1976 = vand.u32 %v1285, 2147483648
    %v1977 = vor.u32 1.1754944e-38, %v1976
    %v1978 = vsel %vm1975, %v1977, %v1973
    %v1979 = vmul.f32 1.0, %v1978
    %v1980 = vrcp.pop %v1286
    %v1981 = vmul.f32 %v1286, %v1980
    %v1982 = vsub.f32 1.0, %v1981
    %v1983 = vmul.f32 %v1980, %v1982
    %v1984 = vadd.f32 %v1980, %v1983
    %vm1985 = vweird.f32 %v1286
    %vm1986 = vweird.f32 %v1980
    %vm1987 = vmor %vm1985, %vm1986
    %v1988 = vsel %vm1987, %v1980, %v1984
    %v1989 = vand.u32 2147483647, %v1286
    %vm1990 = vcmp.eq.f32.partialorder %v1989, 8.507059e+37
    %v1991 = vand.u32 %v1286, 2147483648
    %v1992 = vor.u32 1.1754944e-38, %v1991
    %v1993 = vsel %vm1990, %v1992, %v1988
    %v1994 = vmul.f32 1.0, %v1993
    %v1995 = vrcp.pop %v1287
    %v1996 = vmul.f32 %v1287, %v1995
    %v1997 = vsub.f32 1.0, %v1996
    %v1998 = vmul.f32 %v1995, %v1997
    %v1999 = vadd.f32 %v1995, %v1998
    %vm2000 = vweird.f32 %v1287
    %vm2001 = vweird.f32 %v1995
    %vm2002 = vmor %vm2000, %vm2001
    %v2003 = vsel %vm2002, %v1995, %v1999
    %v2004 = vand.u32 2147483647, %v1287
    %vm2005 = vcmp.eq.f32.partialorder %v2004, 8.507059e+37
    %v2006 = vand.u32 %v1287, 2147483648
    %v2007 = vor.u32 1.1754944e-38, %v2006
    %v2008 = vsel %vm2005, %v2007, %v2003
    %v2009 = vmul.f32 1.0, %v2008
    %v2010 = vrcp.pop %v1288
    %v2011 = vmul.f32 %v1288, %v2010
    %v2012 = vsub.f32 1.0, %v2011
    %v2013 = vmul.f32 %v2010, %v2012
    %v2014 = vadd.f32 %v2010, %v2013
    %vm2015 = vweird.f32 %v1288
    %vm2016 = vweird.f32 %v2010
    %vm2017 = vmor %vm2015, %vm2016
    %v2018 = vsel %vm2017, %v2010, %v2014
    %v2019 = vand.u32 2147483647, %v1288
    %vm2020 = vcmp.eq.f32.partialorder %v2019, 8.507059e+37
    %v2021 = vand.u32 %v1288, 2147483648
    %v2022 = vor.u32 1.1754944e-38, %v2021
    %v2023 = vsel %vm2020, %v2022, %v2018
    %v2024 = vmul.f32 1.0, %v2023
    %v2025 = vrcp.pop %v1289
    %v2026 = vmul.f32 %v1289, %v2025
    %v2027 = vsub.f32 1.0, %v2026
    %v2028 = vmul.f32 %v2025, %v2027
    %v2029 = vadd.f32 %v2025, %v2028
    %vm2030 = vweird.f32 %v1289
    %vm2031 = vweird.f32 %v2025
    %vm2032 = vmor %vm2030, %vm2031
    %v2033 = vsel %vm2032, %v2025, %v2029
    %v2034 = vand.u32 2147483647, %v1289
    %vm2035 = vcmp.eq.f32.partialorder %v2034, 8.507059e+37
    %v2036 = vand.u32 %v1289, 2147483648
    %v2037 = vor.u32 1.1754944e-38, %v2036
    %v2038 = vsel %vm2035, %v2037, %v2033
    %v2039 = vmul.f32 1.0, %v2038
    %v2040 = vrcp.pop %v1290
    %v2041 = vmul.f32 %v1290, %v2040
    %v2042 = vsub.f32 1.0, %v2041
    %v2043 = vmul.f32 %v2040, %v2042
    %v2044 = vadd.f32 %v2040, %v2043
    %vm2045 = vweird.f32 %v1290
    %vm2046 = vweird.f32 %v2040
    %vm2047 = vmor %vm2045, %vm2046
    %v2048 = vsel %vm2047, %v2040, %v2044
    %v2049 = vand.u32 2147483647, %v1290
    %vm2050 = vcmp.eq.f32.partialorder %v2049, 8.507059e+37
    %v2051 = vand.u32 %v1290, 2147483648
    %v2052 = vor.u32 1.1754944e-38, %v2051
    %v2053 = vsel %vm2050, %v2052, %v2048
    %v2054 = vmul.f32 1.0, %v2053
    %v2055 = vrcp.pop %v1291
    %v2056 = vmul.f32 %v1291, %v2055
    %v2057 = vsub.f32 1.0, %v2056
    %v2058 = vmul.f32 %v2055, %v2057
    %v2059 = vadd.f32 %v2055, %v2058
    %vm2060 = vweird.f32 %v1291
    %vm2061 = vweird.f32 %v2055
    %vm2062 = vmor %vm2060, %vm2061
    %v2063 = vsel %vm2062, %v2055, %v2059
    %v2064 = vand.u32 2147483647, %v1291
    %vm2065 = vcmp.eq.f32.partialorder %v2064, 8.507059e+37
    %v2066 = vand.u32 %v1291, 2147483648
    %v2067 = vor.u32 1.1754944e-38, %v2066
    %v2068 = vsel %vm2065, %v2067, %v2063
    %v2069 = vmul.f32 1.0, %v2068
    %v2070 = vrcp.pop %v1292
    %v2071 = vmul.f32 %v1292, %v2070
    %v2072 = vsub.f32 1.0, %v2071
    %v2073 = vmul.f32 %v2070, %v2072
    %v2074 = vadd.f32 %v2070, %v2073
    %vm2075 = vweird.f32 %v1292
    %vm2076 = vweird.f32 %v2070
    %vm2077 = vmor %vm2075, %vm2076
    %v2078 = vsel %vm2077, %v2070, %v2074
    %v2079 = vand.u32 2147483647, %v1292
    %vm2080 = vcmp.eq.f32.partialorder %v2079, 8.507059e+37
    %v2081 = vand.u32 %v1292, 2147483648
    %v2082 = vor.u32 1.1754944e-38, %v2081
    %v2083 = vsel %vm2080, %v2082, %v2078
    %v2084 = vmul.f32 1.0, %v2083
    %v2085 = vrcp.pop %v1293
    %v2086 = vmul.f32 %v1293, %v2085
    %v2087 = vsub.f32 1.0, %v2086
    %v2088 = vmul.f32 %v2085, %v2087
    %v2089 = vadd.f32 %v2085, %v2088
    %vm2090 = vweird.f32 %v1293
    %vm2091 = vweird.f32 %v2085
    %vm2092 = vmor %vm2090, %vm2091
    %v2093 = vsel %vm2092, %v2085, %v2089
    %v2094 = vand.u32 2147483647, %v1293
    %vm2095 = vcmp.eq.f32.partialorder %v2094, 8.507059e+37
    %v2096 = vand.u32 %v1293, 2147483648
    %v2097 = vor.u32 1.1754944e-38, %v2096
    %v2098 = vsel %vm2095, %v2097, %v2093
    %v2099 = vmul.f32 1.0, %v2098
    %v2100 = vrcp.pop %v1294
    %v2101 = vmul.f32 %v1294, %v2100
    %v2102 = vsub.f32 1.0, %v2101
    %v2103 = vmul.f32 %v2100, %v2102
    %v2104 = vadd.f32 %v2100, %v2103
    %vm2105 = vweird.f32 %v1294
    %vm2106 = vweird.f32 %v2100
    %vm2107 = vmor %vm2105, %vm2106
    %v2108 = vsel %vm2107, %v2100, %v2104
    %v2109 = vand.u32 2147483647, %v1294
    %vm2110 = vcmp.eq.f32.partialorder %v2109, 8.507059e+37
    %v2111 = vand.u32 %v1294, 2147483648
    %v2112 = vor.u32 1.1754944e-38, %v2111
    %v2113 = vsel %vm2110, %v2112, %v2108
    %v2114 = vmul.f32 1.0, %v2113
    %v2115 = vrcp.pop %v1295
    %v2116 = vmul.f32 %v1295, %v2115
    %v2117 = vsub.f32 1.0, %v2116
    %v2118 = vmul.f32 %v2115, %v2117
    %v2119 = vadd.f32 %v2115, %v2118
    %vm2120 = vweird.f32 %v1295
    %vm2121 = vweird.f32 %v2115
    %vm2122 = vmor %vm2120, %vm2121
    %v2123 = vsel %vm2122, %v2115, %v2119
    %v2124 = vand.u32 2147483647, %v1295
    %vm2125 = vcmp.eq.f32.partialorder %v2124, 8.507059e+37
    %v2126 = vand.u32 %v1295, 2147483648
    %v2127 = vor.u32 1.1754944e-38, %v2126
    %v2128 = vsel %vm2125, %v2127, %v2123
    %v2129 = vmul.f32 1.0, %v2128
    %v2130 = vrcp.pop %v1296
    %v2131 = vmul.f32 %v1296, %v2130
    %v2132 = vsub.f32 1.0, %v2131
    %v2133 = vmul.f32 %v2130, %v2132
    %v2134 = vadd.f32 %v2130, %v2133
    %vm2135 = vweird.f32 %v1296
    %vm2136 = vweird.f32 %v2130
    %vm2137 = vmor %vm2135, %vm2136
    %v2138 = vsel %vm2137, %v2130, %v2134
    %v2139 = vand.u32 2147483647, %v1296
    %vm2140 = vcmp.eq.f32.partialorder %v2139, 8.507059e+37
    %v2141 = vand.u32 %v1296, 2147483648
    %v2142 = vor.u32 1.1754944e-38, %v2141
    %v2143 = vsel %vm2140, %v2142, %v2138
    %v2144 = vmul.f32 1.0, %v2143
    %v2145 = vrcp.pop %v1297
    %v2146 = vmul.f32 %v1297, %v2145
    %v2147 = vsub.f32 1.0, %v2146
    %v2148 = vmul.f32 %v2145, %v2147
    %v2149 = vadd.f32 %v2145, %v2148
    %vm2150 = vweird.f32 %v1297
    %vm2151 = vweird.f32 %v2145
    %vm2152 = vmor %vm2150, %vm2151
    %v2153 = vsel %vm2152, %v2145, %v2149
    %v2154 = vand.u32 2147483647, %v1297
    %vm2155 = vcmp.eq.f32.partialorder %v2154, 8.507059e+37
    %v2156 = vand.u32 %v1297, 2147483648
    %v2157 = vor.u32 1.1754944e-38, %v2156
    %v2158 = vsel %vm2155, %v2157, %v2153
    %v2159 = vmul.f32 1.0, %v2158
    %v2160 = vrcp.pop %v1298
    %v2161 = vmul.f32 %v1298, %v2160
    %v2162 = vsub.f32 1.0, %v2161
    %v2163 = vmul.f32 %v2160, %v2162
    %v2164 = vadd.f32 %v2160, %v2163
    %vm2165 = vweird.f32 %v1298
    %vm2166 = vweird.f32 %v2160
    %vm2167 = vmor %vm2165, %vm2166
    %v2168 = vsel %vm2167, %v2160, %v2164
    %v2169 = vand.u32 2147483647, %v1298
    %vm2170 = vcmp.eq.f32.partialorder %v2169, 8.507059e+37
    %v2171 = vand.u32 %v1298, 2147483648
    %v2172 = vor.u32 1.1754944e-38, %v2171
    %v2173 = vsel %vm2170, %v2172, %v2168
    %v2174 = vmul.f32 1.0, %v2173
    %v2175 = vrcp.pop %v1299
    %v2176 = vmul.f32 %v1299, %v2175
    %v2177 = vsub.f32 1.0, %v2176
    %v2178 = vmul.f32 %v2175, %v2177
    %v2179 = vadd.f32 %v2175, %v2178
    %vm2180 = vweird.f32 %v1299
    %vm2181 = vweird.f32 %v2175
    %vm2182 = vmor %vm2180, %vm2181
    %v2183 = vsel %vm2182, %v2175, %v2179
    %v2184 = vand.u32 2147483647, %v1299
    %vm2185 = vcmp.eq.f32.partialorder %v2184, 8.507059e+37
    %v2186 = vand.u32 %v1299, 2147483648
    %v2187 = vor.u32 1.1754944e-38, %v2186
    %v2188 = vsel %vm2185, %v2187, %v2183
    %v2189 = vmul.f32 1.0, %v2188
    %v2190 = vrcp.pop %v1300
    %v2191 = vmul.f32 %v1300, %v2190
    %v2192 = vsub.f32 1.0, %v2191
    %v2193 = vmul.f32 %v2190, %v2192
    %v2194 = vadd.f32 %v2190, %v2193
    %vm2195 = vweird.f32 %v1300
    %vm2196 = vweird.f32 %v2190
    %vm2197 = vmor %vm2195, %vm2196
    %v2198 = vsel %vm2197, %v2190, %v2194
    %v2199 = vand.u32 2147483647, %v1300
    %vm2200 = vcmp.eq.f32.partialorder %v2199, 8.507059e+37
    %v2201 = vand.u32 %v1300, 2147483648
    %v2202 = vor.u32 1.1754944e-38, %v2201
    %v2203 = vsel %vm2200, %v2202, %v2198
    %v2204 = vmul.f32 1.0, %v2203
    %v2205 = vrcp.pop %v1301
    %v2206 = vmul.f32 %v1301, %v2205
    %v2207 = vsub.f32 1.0, %v2206
    %v2208 = vmul.f32 %v2205, %v2207
    %v2209 = vadd.f32 %v2205, %v2208
    %vm2210 = vweird.f32 %v1301
    %vm2211 = vweird.f32 %v2205
    %vm2212 = vmor %vm2210, %vm2211
    %v2213 = vsel %vm2212, %v2205, %v2209
    %v2214 = vand.u32 2147483647, %v1301
    %vm2215 = vcmp.eq.f32.partialorder %v2214, 8.507059e+37
    %v2216 = vand.u32 %v1301, 2147483648
    %v2217 = vor.u32 1.1754944e-38, %v2216
    %v2218 = vsel %vm2215, %v2217, %v2213
    %v2219 = vmul.f32 1.0, %v2218
    %v2220 = vrcp.pop %v1302
    %v2221 = vmul.f32 %v1302, %v2220
    %v2222 = vsub.f32 1.0, %v2221
    %v2223 = vmul.f32 %v2220, %v2222
    %v2224 = vadd.f32 %v2220, %v2223
    %vm2225 = vweird.f32 %v1302
    %vm2226 = vweird.f32 %v2220
    %vm2227 = vmor %vm2225, %vm2226
    %v2228 = vsel %vm2227, %v2220, %v2224
    %v2229 = vand.u32 2147483647, %v1302
    %vm2230 = vcmp.eq.f32.partialorder %v2229, 8.507059e+37
    %v2231 = vand.u32 %v1302, 2147483648
    %v2232 = vor.u32 1.1754944e-38, %v2231
    %v2233 = vsel %vm2230, %v2232, %v2228
    %v2234 = vmul.f32 1.0, %v2233
    %v2235 = vrcp.pop %v1303
    %v2236 = vmul.f32 %v1303, %v2235
    %v2237 = vsub.f32 1.0, %v2236
    %v2238 = vmul.f32 %v2235, %v2237
    %v2239 = vadd.f32 %v2235, %v2238
    %vm2240 = vweird.f32 %v1303
    %vm2241 = vweird.f32 %v2235
    %vm2242 = vmor %vm2240, %vm2241
    %v2243 = vsel %vm2242, %v2235, %v2239
    %v2244 = vand.u32 2147483647, %v1303
    %vm2245 = vcmp.eq.f32.partialorder %v2244, 8.507059e+37
    %v2246 = vand.u32 %v1303, 2147483648
    %v2247 = vor.u32 1.1754944e-38, %v2246
    %v2248 = vsel %vm2245, %v2247, %v2243
    %v2249 = vmul.f32 1.0, %v2248
    %v2250 = vrcp.pop %v1304
    %v2251 = vmul.f32 %v1304, %v2250
    %v2252 = vsub.f32 1.0, %v2251
    %v2253 = vmul.f32 %v2250, %v2252
    %v2254 = vadd.f32 %v2250, %v2253
    %vm2255 = vweird.f32 %v1304
    %vm2256 = vweird.f32 %v2250
    %vm2257 = vmor %vm2255, %vm2256
    %v2258 = vsel %vm2257, %v2250, %v2254
    %v2259 = vand.u32 2147483647, %v1304
    %vm2260 = vcmp.eq.f32.partialorder %v2259, 8.507059e+37
    %v2261 = vand.u32 %v1304, 2147483648
    %v2262 = vor.u32 1.1754944e-38, %v2261
    %v2263 = vsel %vm2260, %v2262, %v2258
    %v2264 = vmul.f32 1.0, %v2263
    %vm2265 = vcmask 7168
    %2266 = vst.msk [vmem:[%s5] sm:$0xff] %vm2265, %v1319
    %2267 = vst.msk [vmem:[%s5 + $0x8] sm:$0xff] %vm2265, %v1334
    %2268 = vst.msk [vmem:[%s5 + $0x10] sm:$0xff] %vm2265, %v1349
    %2269 = vst.msk [vmem:[%s5 + $0x18] sm:$0xff] %vm2265, %v1364
    %2270 = vst.msk [vmem:[%s5 + $0x20] sm:$0xff] %vm2265, %v1379
    %2271 = vst.msk [vmem:[%s5 + $0x28] sm:$0xff] %vm2265, %v1394
    %2272 = vst.msk [vmem:[%s5 + $0x30] sm:$0xff] %vm2265, %v1409
    %2273 = vst.msk [vmem:[%s5 + $0x38] sm:$0xff] %vm2265, %v1424
    %2274 = vst.msk [vmem:[%s5 + $0x40] sm:$0xff] %vm2265, %v1439
    %2275 = vst.msk [vmem:[%s5 + $0x48] sm:$0xff] %vm2265, %v1454
    %2276 = vst.msk [vmem:[%s5 + $0x50] sm:$0xff] %vm2265, %v1469
    %2277 = vst.msk [vmem:[%s5 + $0x58] sm:$0xff] %vm2265, %v1484
    %2278 = vst.msk [vmem:[%s5 + $0x60] sm:$0xff] %vm2265, %v1499
    %2279 = vst.msk [vmem:[%s5 + $0x68] sm:$0xff] %vm2265, %v1514
    %2280 = vst.msk [vmem:[%s5 + $0x70] sm:$0xff] %vm2265, %v1529
    %2281 = vst.msk [vmem:[%s5 + $0x78] sm:$0xff] %vm2265, %v1544
    %2282 = vst.msk [vmem:[%s5 + $0x80] sm:$0xff] %vm2265, %v1559
    %2283 = vst.msk [vmem:[%s5 + $0x88] sm:$0xff] %vm2265, %v1574
    %2284 = vst.msk [vmem:[%s5 + $0x90] sm:$0xff] %vm2265, %v1589
    %2285 = vst.msk [vmem:[%s5 + $0x98] sm:$0xff] %vm2265, %v1604
    %2286 = vst.msk [vmem:[%s5 + $0xa0] sm:$0xff] %vm2265, %v1619
    %2287 = vst.msk [vmem:[%s5 + $0xa8] sm:$0xff] %vm2265, %v1634
    %2288 = vst.msk [vmem:[%s5 + $0xb0] sm:$0xff] %vm2265, %v1649
    %2289 = vst.msk [vmem:[%s5 + $0xb8] sm:$0xff] %vm2265, %v1664
    %2290 = vst.msk [vmem:[%s5 + $0xc0] sm:$0xff] %vm2265, %v1679
    %2291 = vst.msk [vmem:[%s5 + $0xc8] sm:$0xff] %vm2265, %v1694
    %2292 = vst.msk [vmem:[%s5 + $0xd0] sm:$0xff] %vm2265, %v1709
    %2293 = vst.msk [vmem:[%s5 + $0xd8] sm:$0xff] %vm2265, %v1724
    %2294 = vst.msk [vmem:[%s5 + $0xe0] sm:$0xff] %vm2265, %v1739
    %2295 = vst.msk [vmem:[%s5 + $0xe8] sm:$0xff] %vm2265, %v1754
    %2296 = vst.msk [vmem:[%s5 + $0xf0] sm:$0xff] %vm2265, %v1769
    %2297 = vst.msk [vmem:[%s5 + $0xf8] sm:$0xff] %vm2265, %v1784
    %2298 = vst.msk [vmem:[%s5 + $0x100] sm:$0xff] %vm2265, %v1799
    %2299 = vst.msk [vmem:[%s5 + $0x108] sm:$0xff] %vm2265, %v1814
    %2300 = vst.msk [vmem:[%s5 + $0x110] sm:$0xff] %vm2265, %v1829
    %2301 = vst.msk [vmem:[%s5 + $0x118] sm:$0xff] %vm2265, %v1844
    %2302 = vst.msk [vmem:[%s5 + $0x120] sm:$0xff] %vm2265, %v1859
    %2303 = vst.msk [vmem:[%s5 + $0x128] sm:$0xff] %vm2265, %v1874
    %2304 = vst.msk [vmem:[%s5 + $0x130] sm:$0xff] %vm2265, %v1889
    %2305 = vst.msk [vmem:[%s5 + $0x138] sm:$0xff] %vm2265, %v1904
    %2306 = vst.msk [vmem:[%s5 + $0x140] sm:$0xff] %vm2265, %v1919
    %2307 = vst.msk [vmem:[%s5 + $0x148] sm:$0xff] %vm2265, %v1934
    %2308 = vst.msk [vmem:[%s5 + $0x150] sm:$0xff] %vm2265, %v1949
    %2309 = vst.msk [vmem:[%s5 + $0x158] sm:$0xff] %vm2265, %v1964
    %2310 = vst.msk [vmem:[%s5 + $0x160] sm:$0xff] %vm2265, %v1979
    %2311 = vst.msk [vmem:[%s5 + $0x168] sm:$0xff] %vm2265, %v1994
    %2312 = vst.msk [vmem:[%s5 + $0x170] sm:$0xff] %vm2265, %v2009
    %2313 = vst.msk [vmem:[%s5 + $0x178] sm:$0xff] %vm2265, %v2024
    %2314 = vst.msk [vmem:[%s5 + $0x180] sm:$0xff] %vm2265, %v2039
    %2315 = vst.msk [vmem:[%s5 + $0x188] sm:$0xff] %vm2265, %v2054
    %2316 = vst.msk [vmem:[%s5 + $0x190] sm:$0xff] %vm2265, %v2069
    %2317 = vst.msk [vmem:[%s5 + $0x198] sm:$0xff] %vm2265, %v2084
    %2318 = vst.msk [vmem:[%s5 + $0x1a0] sm:$0xff] %vm2265, %v2099
    %2319 = vst.msk [vmem:[%s5 + $0x1a8] sm:$0xff] %vm2265, %v2114
    %2320 = vst.msk [vmem:[%s5 + $0x1b0] sm:$0xff] %vm2265, %v2129
    %2321 = vst.msk [vmem:[%s5 + $0x1b8] sm:$0xff] %vm2265, %v2144
    %2322 = vst.msk [vmem:[%s5 + $0x1c0] sm:$0xff] %vm2265, %v2159
    %2323 = vst.msk [vmem:[%s5 + $0x1c8] sm:$0xff] %vm2265, %v2174
    %2324 = vst.msk [vmem:[%s5 + $0x1d0] sm:$0xff] %vm2265, %v2189
    %2325 = vst.msk [vmem:[%s5 + $0x1d8] sm:$0xff] %vm2265, %v2204
    %2326 = vst.msk [vmem:[%s5 + $0x1e0] sm:$0xff] %vm2265, %v2219
    %2327 = vst.msk [vmem:[%s5 + $0x1e8] sm:$0xff] %vm2265, %v2234
    %2328 = vst.msk [vmem:[%s5 + $0x1f0] sm:$0xff] %vm2265, %v2249
    %2329 = vst.msk [vmem:[%s5 + $0x1f8] sm:$0xff] %vm2265, %v2264
    // Predicated region
    $region26: #{se_forward.2} parent=1 // pred_check
      _
    $region27: #{se_forward.2} parent=1 // pred_check_branch
      %2331 = sbr.rel (0) target = $region29
    $region28: #{se_forward.2} parent=1 // pred_region
      _
    $region29: #{se_forward.2} parent=1 // pred_fallthru
      _
    // Predicated region
    $region30: #{se_forward.2} parent=1 // pred_check
      _
    $region31: #{se_forward.2} parent=1 // pred_check_branch
      %2333 = sbr.rel (0) target = $region33
    $region32: #{se_forward.2} parent=1 // pred_region
      _
    $region33: #{se_forward.2} parent=1 // pred_fallthru
      _
    %2334 = vsyncpa [#allocation3], 1

</llo_original>
